<compile_context>
chip_gen: v7x
topology: tpu7x:2x2x1
jax: 0.10.0
libtpu: 0.0.40
codegen_flags: <defaults>
</compile_context>

<pallas_src>
import jax
import jax.numpy as jnp
from jax.experimental import pallas as pl
from jax.experimental.pallas import tpu as pltpu

_LANE = 128  # TPU lane width


def _round_up(n, m):
    return ((n + m - 1) // m) * m


def _cdiv(a, b):
    return -(-a // b)


def _mlp_kernel(x_ref, w1_ref, b1_ref, w2_ref, b2_ref, w3_ref, b3_ref, o_ref):
    """Fused 3-layer MLP for one batch tile. Weights are VMEM-resident."""
    x = x_ref[...]                                            # [TB, IN] f32
    # fc1 + ReLU : f32 MXU (K = input_size is tiny; exact first layer).
    h1 = jnp.dot(x, w1_ref[...], preferred_element_type=jnp.float32)
    h1 = jnp.maximum(h1 + b1_ref[...], 0.0)                   # [TB, H_P] f32
    # fc2 + ReLU : bf16 MXU operands, f32 accumulation.
    h2 = jnp.dot(h1.astype(jnp.bfloat16), w2_ref[...],
                 preferred_element_type=jnp.float32)
    h2 = jnp.maximum(h2 + b2_ref[...], 0.0)                   # [TB, H_P] f32
    # fc3 (no activation); narrow (out_size-lane) f32 store.
    out = jnp.dot(h2.astype(jnp.bfloat16), w3_ref[...],
                  preferred_element_type=jnp.float32)
    o_ref[...] = out + b3_ref[...]                            # [TB, OUT] f32


def prepare_params(params):
    """One-time padding/casting of the weights. Do NOT call per forward.

    Zero padding keeps the math exact: padded hidden columns get bias 0 and
    relu(0) = 0, and their downstream weight rows are zero.
    """
    w1, b1 = params["w1"], params["b1"]
    w2, b2 = params["w2"], params["b2"]
    w3, b3 = params["w3"], params["b3"]
    in_size, hidden = w1.shape
    out_size = w3.shape[1]
    h_p = _round_up(hidden, _LANE)

    pad2 = lambda a, r, c: jnp.pad(a, ((0, r - a.shape[0]), (0, c - a.shape[1])))
    return {
        # fc1: f32, K stays = input_size to match the unpadded x stream.
        "w1": pad2(w1, in_size, h_p).astype(jnp.float32),      # [IN, H_P]
        "b1": pad2(b1, 1, h_p).astype(jnp.float32),            # [1, H_P]
        # fc2 / fc3: bf16 MXU operands.
        "w2": pad2(w2, h_p, h_p).astype(jnp.bfloat16),         # [H_P, H_P]
        "b2": pad2(b2, 1, h_p).astype(jnp.float32),            # [1, H_P]
        "w3": pad2(w3, h_p, out_size).astype(jnp.bfloat16),    # [H_P, OUT]
        "b3": b3.astype(jnp.float32),                          # [1, OUT]
    }


def predictive_model_forward(x, prepared, *, batch_tile=512):
    """x: [B, input_size] float32. prepared: output of prepare_params()."""
    in_size, h_p = prepared["w1"].shape
    out_size = prepared["w3"].shape[1]
    B = x.shape[0]
    assert x.shape[1] == in_size

    # Batch tile: multiple of 16, large enough to amortize ~0.35 us/step grid
    # overhead; force >= 2 grid steps so v7x's two TensorCores both get work.
    tb = max(16, min(_round_up(batch_tile, 16), _round_up(B, 16)))
    b_p = _round_up(B, tb)
    if b_p // tb < 2 and b_p >= 32:
        tb = max(16, _round_up(_cdiv(b_p, 2), 16))
        b_p = _round_up(B, tb)

    xb = x if b_p == B else jnp.pad(x, ((0, b_p - B), (0, 0)))

    # Constant index_map -> operand stays resident in VMEM across iterations.
    resident = lambda shape: pl.BlockSpec(shape, lambda i: (0, 0))

    flops = 2 * b_p * (in_size * h_p + h_p * h_p + h_p * out_size)
    bytes_accessed = (b_p * in_size * 4 + b_p * out_size * 4          # x, out
                      + in_size * h_p * 4                             # w1 f32
                      + (h_p * h_p + h_p * out_size) * 2              # w2, w3 bf16
                      + (2 * h_p + out_size) * 4)                     # biases

    out = pl.pallas_call(
        _mlp_kernel,
        out_shape=jax.ShapeDtypeStruct((b_p, out_size), jnp.float32),
        grid=(b_p // tb,),
        in_specs=[
            pl.BlockSpec((tb, in_size), lambda i: (i, 0)),    # x: streamed, unpadded lanes
            resident((in_size, h_p)), resident((1, h_p)),     # fc1 W, b
            resident((h_p, h_p)), resident((1, h_p)),         # fc2 W, b
            resident((h_p, out_size)), resident((1, out_size)),  # fc3 W, b
        ],
        out_specs=pl.BlockSpec((tb, out_size), lambda i: (i, 0)),
        compiler_params=pltpu.CompilerParams(
            dimension_semantics=("parallel",),   # v7x: shard batch tiles over 2 TCs
        ),
        cost_estimate=pl.CostEstimate(flops=flops, transcendentals=0,
                                      bytes_accessed=bytes_accessed),
    )(xb, prepared["w1"], prepared["b1"], prepared["w2"], prepared["b2"],
      prepared["w3"], prepared["b3"])

    return out if b_p == B else out[:B]


def init_params(key, input_size, output_size, hidden=64):
    """Deterministic PyTorch-style init: U(-1/sqrt(fan_in), 1/sqrt(fan_in))."""
    keys = jax.random.split(key, 6)

    def linear(kw, kb, fan_in, fan_out):
        bound = 1.0 / jnp.sqrt(float(fan_in))
        w = jax.random.uniform(kw, (fan_in, fan_out), jnp.float32, -bound, bound)
        b = jax.random.uniform(kb, (1, fan_out), jnp.float32, -bound, bound)
        return w, b

    w1, b1 = linear(keys[0], keys[1], input_size, hidden)
    w2, b2 = linear(keys[2], keys[3], hidden, hidden)
    w3, b3 = linear(keys[4], keys[5], hidden, output_size)
    return {"w1": w1, "b1": b1, "w2": w2, "b2": b2, "w3": w3, "b3": b3}


def reference_forward_f32(x, p):
    h1 = jnp.maximum(x @ p["w1"] + p["b1"], 0.0)
    h2 = jnp.maximum(h1 @ p["w2"] + p["b2"], 0.0)
    return h2 @ p["w3"] + p["b3"]


def reference_forward_kernel_numerics(x, p):
    """Mirrors the kernel numerics: fc1 f32; fc2/fc3 bf16 operands, f32 accum."""
    bf = jnp.bfloat16
    h1 = jnp.maximum(x @ p["w1"] + p["b1"], 0.0)
    h2 = jnp.maximum(
        jnp.dot(h1.astype(bf), p["w2"].astype(bf),
                preferred_element_type=jnp.float32) + p["b2"], 0.0)
    return jnp.dot(h2.astype(bf), p["w3"].astype(bf),
                   preferred_element_type=jnp.float32) + p["b3"]


if __name__ == "__main__":
    key = jax.random.PRNGKey(0)
    k_params, k_x = jax.random.split(key)

    batch = 1024       # two 512-row tiles -> exercises the parallel batch grid
    input_size = 8     # e.g. state-vector size
    output_size = 4    # e.g. predicted next-state / feature size

    params = init_params(k_params, input_size, output_size)
    prepared = prepare_params(params)            # one-time pad + cast (cached)
    x = jax.random.normal(k_x, (batch, input_size), jnp.float32)

    y = predictive_model_forward(x, prepared)
    y = jax.block_until_ready(y)
    assert y.shape == (batch, output_size)

    # Tight check vs. a reference with the kernel's exact numerics.
    y_match = reference_forward_kernel_numerics(x, params)
    assert jnp.allclose(y, y_match, atol=5e-3, rtol=5e-3), \
        "mismatch vs kernel-numerics reference"

    # Loose sanity check vs. pure-f32 PyTorch-equivalent math
    # (fc2/fc3 matmul operands are bf16).
    y_f32 = reference_forward_f32(x, params)
    assert jnp.allclose(y, y_f32, atol=1e-1, rtol=1e-1), \
        "mismatch vs f32 reference"

    print("KERNEL_OK")
</pallas_src>

<mosaic_0001>
module attributes {stable_mosaic.version = 11 : i64} {
  func.func @_mlp_kernel(%arg0: i32, %arg1: memref<512x8xf32, #tpu.memory_space<vmem>>, %arg2: memref<8x128xf32, #tpu.memory_space<vmem>>, %arg3: memref<1x128xf32, #tpu.memory_space<vmem>>, %arg4: memref<128x128xbf16, #tpu.memory_space<vmem>>, %arg5: memref<1x128xf32, #tpu.memory_space<vmem>>, %arg6: memref<128x4xbf16, #tpu.memory_space<vmem>>, %arg7: memref<1x4xf32, #tpu.memory_space<vmem>>, %arg8: memref<512x4xf32, #tpu.memory_space<vmem>>) attributes {dimension_semantics = [#tpu.dimension_semantics<parallel>], iteration_bounds = array<i64: 2>, scalar_prefetch = 0 : i64, scratch_operands = 0 : i64, tpu.core_type = #tpu.core_type<tc>, window_params = [{transform_indices = @transform_0, window_bounds = array<i64: 512, 8>}, {pipeline_mode = #tpu.pipeline_mode<synchronous>, transform_indices = @transform_1, window_bounds = array<i64: 8, 128>}, {pipeline_mode = #tpu.pipeline_mode<synchronous>, transform_indices = @transform_2, window_bounds = array<i64: 1, 128>}, {pipeline_mode = #tpu.pipeline_mode<synchronous>, transform_indices = @transform_3, window_bounds = array<i64: 128, 128>}, {pipeline_mode = #tpu.pipeline_mode<synchronous>, transform_indices = @transform_4, window_bounds = array<i64: 1, 128>}, {pipeline_mode = #tpu.pipeline_mode<synchronous>, transform_indices = @transform_5, window_bounds = array<i64: 128, 4>}, {pipeline_mode = #tpu.pipeline_mode<synchronous>, transform_indices = @transform_6, window_bounds = array<i64: 1, 4>}, {transform_indices = @transform_7, window_bounds = array<i64: 512, 4>}]} {
    %c0 = arith.constant 0 : index
    %c0_0 = arith.constant 0 : index
    %0 = vector.load %arg1[%c0, %c0_0] : memref<512x8xf32, #tpu.memory_space<vmem>>, vector<512x8xf32>
    %c0_1 = arith.constant 0 : index
    %c0_2 = arith.constant 0 : index
    %1 = vector.load %arg2[%c0_1, %c0_2] : memref<8x128xf32, #tpu.memory_space<vmem>>, vector<8x128xf32>
    %cst = arith.constant dense<0.000000e+00> : vector<512x128xf32>
    %2 = tpu.matmul %0, %1, %cst {dimension_numbers = #tpu.dot_dimension_numbers<[1], [0], [0], [1], [0, 0, 1, 1], [], []>} : vector<512x8xf32>, vector<8x128xf32>, vector<512x128xf32> -> vector<512x128xf32>
    %c0_3 = arith.constant 0 : index
    %c0_4 = arith.constant 0 : index
    %3 = vector.load %arg3[%c0_3, %c0_4] : memref<1x128xf32, #tpu.memory_space<vmem>>, vector<1x128xf32>
    %4 = vector.broadcast %3 : vector<1x128xf32> to vector<512x128xf32>
    %5 = arith.addf %2, %4 : vector<512x128xf32>
    %cst_5 = arith.constant 0.000000e+00 : f32
    %6 = vector.broadcast %cst_5 : f32 to vector<512x128xf32>
    %7 = arith.maximumf %5, %6 : vector<512x128xf32>
    %8 = arith.truncf %7 : vector<512x128xf32> to vector<512x128xbf16>
    %c0_6 = arith.constant 0 : index
    %c0_7 = arith.constant 0 : index
    %9 = vector.load %arg4[%c0_6, %c0_7] : memref<128x128xbf16, #tpu.memory_space<vmem>>, vector<128x128xbf16>
    %cst_8 = arith.constant dense<0.000000e+00> : vector<512x128xf32>
    %10 = tpu.matmul %8, %9, %cst_8 {dimension_numbers = #tpu.dot_dimension_numbers<[1], [0], [0], [1], [0, 0, 1, 1], [], []>} : vector<512x128xbf16>, vector<128x128xbf16>, vector<512x128xf32> -> vector<512x128xf32>
    %c0_9 = arith.constant 0 : index
    %c0_10 = arith.constant 0 : index
    %11 = vector.load %arg5[%c0_9, %c0_10] : memref<1x128xf32, #tpu.memory_space<vmem>>, vector<1x128xf32>
    %12 = vector.broadcast %11 : vector<1x128xf32> to vector<512x128xf32>
    %13 = arith.addf %10, %12 : vector<512x128xf32>
    %cst_11 = arith.constant 0.000000e+00 : f32
    %14 = vector.broadcast %cst_11 : f32 to vector<512x128xf32>
    %15 = arith.maximumf %13, %14 : vector<512x128xf32>
    %16 = arith.truncf %15 : vector<512x128xf32> to vector<512x128xbf16>
    %c0_12 = arith.constant 0 : index
    %c0_13 = arith.constant 0 : index
    %17 = vector.load %arg6[%c0_12, %c0_13] : memref<128x4xbf16, #tpu.memory_space<vmem>>, vector<128x4xbf16>
    %cst_14 = arith.constant dense<0.000000e+00> : vector<512x4xf32>
    %18 = tpu.matmul %16, %17, %cst_14 {dimension_numbers = #tpu.dot_dimension_numbers<[1], [0], [0], [1], [0, 0, 1, 1], [], []>} : vector<512x128xbf16>, vector<128x4xbf16>, vector<512x4xf32> -> vector<512x4xf32>
    %c0_15 = arith.constant 0 : index
    %c0_16 = arith.constant 0 : index
    %19 = vector.load %arg7[%c0_15, %c0_16] : memref<1x4xf32, #tpu.memory_space<vmem>>, vector<1x4xf32>
    %20 = vector.broadcast %19 : vector<1x4xf32> to vector<512x4xf32>
    %21 = arith.addf %18, %20 : vector<512x4xf32>
    %c0_17 = arith.constant 0 : index
    %c0_18 = arith.constant 0 : index
    %22 = vector.load %arg8[%c0_17, %c0_18] : memref<512x4xf32, #tpu.memory_space<vmem>>, vector<512x4xf32>
    tpu.vector_store %arg8[%c0_17, %c0_18], %21 {strides = array<i32>} : memref<512x4xf32, #tpu.memory_space<vmem>>, vector<512x4xf32>,
    return
  }
  func.func @transform_0(%arg0: i32) -> (i32, i32) {
    %c0_i32 = arith.constant 0 : i32
    %c0_i32_0 = arith.constant 0 : i32
    return %arg0, %c0_i32 : i32, i32
  }
  func.func @transform_1(%arg0: i32) -> (i32, i32) {
    %c0_i32 = arith.constant 0 : i32
    %c0_i32_0 = arith.constant 0 : i32
    %c0_i32_1 = arith.constant 0 : i32
    return %c0_i32, %c0_i32_0 : i32, i32
  }
  func.func @transform_2(%arg0: i32) -> (i32, i32) {
    %c0_i32 = arith.constant 0 : i32
    %c0_i32_0 = arith.constant 0 : i32
    %c0_i32_1 = arith.constant 0 : i32
    return %c0_i32, %c0_i32_0 : i32, i32
  }
  func.func @transform_3(%arg0: i32) -> (i32, i32) {
    %c0_i32 = arith.constant 0 : i32
    %c0_i32_0 = arith.constant 0 : i32
    %c0_i32_1 = arith.constant 0 : i32
    return %c0_i32, %c0_i32_0 : i32, i32
  }
  func.func @transform_4(%arg0: i32) -> (i32, i32) {
    %c0_i32 = arith.constant 0 : i32
    %c0_i32_0 = arith.constant 0 : i32
    %c0_i32_1 = arith.constant 0 : i32
    return %c0_i32, %c0_i32_0 : i32, i32
  }
  func.func @transform_5(%arg0: i32) -> (i32, i32) {
    %c0_i32 = arith.constant 0 : i32
    %c0_i32_0 = arith.constant 0 : i32
    %c0_i32_1 = arith.constant 0 : i32
    return %c0_i32, %c0_i32_0 : i32, i32
  }
  func.func @transform_6(%arg0: i32) -> (i32, i32) {
    %c0_i32 = arith.constant 0 : i32
    %c0_i32_0 = arith.constant 0 : i32
    %c0_i32_1 = arith.constant 0 : i32
    return %c0_i32, %c0_i32_0 : i32, i32
  }
  func.func @transform_7(%arg0: i32) -> (i32, i32) {
    %c0_i32 = arith.constant 0 : i32
    %c0_i32_0 = arith.constant 0 : i32
    return %arg0, %c0_i32 : i32, i32
  }
}

</mosaic_0001>

<llo_original>
// kernel: tpu_custom_call.1
$region0: #{tpu_custom_call.1}
  #allocation0 [shape = 'u32[]', space=smem, size = 0x4, offset = 0x4, fixed_abs, tag = 'smem constant byte address 0x4 - core index']
  #allocation1 [shape = 'u32[144,128]{1,0:T(1,128)}', space=vmem, size = 0x12000, scoped, tag = 'internal scratch']
  %s0 = inlined_call_operand.vmem [shape: f32[1024,8], index: 0, kind: input, shape index: {}]
  %s1 = inlined_call_operand.vmem [shape: f32[8,128], index: 1, kind: input, shape index: {}]
  %s2 = inlined_call_operand.vmem [shape: f32[1,128], index: 2, kind: input, shape index: {}]
  %s3 = inlined_call_operand.vmem [shape: bf16[128,128], index: 3, kind: input, shape index: {}]
  %s4 = inlined_call_operand.vmem [shape: f32[1,128], index: 4, kind: input, shape index: {}]
  %s5 = inlined_call_operand.vmem [shape: bf16[128,4], index: 5, kind: input, shape index: {}]
  %s6 = inlined_call_operand.vmem [shape: f32[1,4], index: 6, kind: input, shape index: {}]
  %s7 = inlined_call_operand.vmem [shape: f32[1024,4], index: 7, kind: output, shape index: {}]
  %s8 = sld [smem:[#allocation0]]
  $region61: #{tpu_custom_call.1} parent=0
    _
  %s10 = ssub.s32 1, %s8
  %s11 = scalar_select 0, %s10, %s8
  loop: start=0, step=1, limit=4
  $region2: #{tpu_custom_call.1} parent=0 // loop_pre_header
    _
  $region3: #{tpu_custom_call.1} parent=0 // loop_header
    %s13 = sphi 0, %s17
    %p14 = scmp.ge.s32.totalorder %s13, 4
    %s23 = sphi 0, %s25
    %s26 = sphi 0, %s23
    %s27 = sphi 0, %s26
    %s43 = sphi 0, %s27
    %s47 = sphi 0, %s47
    %s49 = sphi 0, %s47
    %s50 = sphi 0, %s49
    %s64 = sphi 0, %s50
    %s68 = sphi 0, %s68
    %s70 = sphi 0, %s68
    %s71 = sphi 0, %s70
    %s85 = sphi 0, %s71
    %s89 = sphi 0, %s89
    %s91 = sphi 0, %s89
    %s92 = sphi 0, %s91
    %s106 = sphi 0, %s92
    %s110 = sphi 0, %s110
    %s112 = sphi 0, %s110
    %s113 = sphi 0, %s112
    %s127 = sphi 0, %s113
    %s131 = sphi 0, %s131
    %s133 = sphi 0, %s131
    %s134 = sphi 0, %s133
    %s148 = sphi 0, %s134
    %s152 = sphi 0, %s152
    %s154 = sphi 0, %s152
    %s155 = sphi 0, %s154
    %s169 = sphi 0, %s155
    %s175 = sphi 0, %s177
    %s178 = sphi 0, %s175
    %s179 = sphi 0, %s178
    %s195 = sphi 0, %s179
  $region4: #{tpu_custom_call.1} parent=0 // loop_header_branch
    %16 = sbr.rel (%p14) target = $region8
  $region5: #{tpu_custom_call.1} parent=0 // loop_body
    %s18 = ssub.s32 %s13, 1
    %s19 = ssub.s32 %s13, 2
    %s20 = sadd.s32 %s13, 1
    %s21 = ssub.s32 %s13, %s20
    %p22 = scmp.eq.s32.totalorder %s21, 0
    %s24 = sadd.s32 %s23, 1
    %s25 = scalar_select %p22, %s23, %s24
    %p28 = pneg %p22
    %p29 = scmp.eq.s32.totalorder %s13, 1
    %p30 = por %p28, %p29
    %p31 = scmp.ne.s32.totalorder %s23, %s26
    %p32 = scmp.eq.s32.totalorder %s13, 0
    %p33 = por %p31, %p32
    %p34 = scmp.ne.s32.totalorder %s23, %s26
    %p35 = scmp.eq.s32.totalorder %s18, 1
    %p36 = por %p34, %p35
    %p37 = scmp.ne.s32.totalorder %s26, %s27
    %p38 = scmp.eq.s32.totalorder %s18, 0
    %p39 = por %p37, %p38
    %p40 = scmp.ne.s32.totalorder %s26, %s27
    %p41 = scmp.eq.s32.totalorder %s19, 1
    %p42 = por %p40, %p41
    %p44 = scmp.ne.s32.totalorder %s27, %s43
    %p45 = scmp.eq.s32.totalorder %s19, 0
    %p46 = por %p44, %p45
    %s48 = sadd.s32 %s47, 1
    %p51 = scmp.eq.s32.totalorder %s13, 1
    %p52 = scmp.ne.s32.totalorder %s47, %s49
    %p53 = scmp.eq.s32.totalorder %s13, 0
    %p54 = por %p52, %p53
    %p55 = scmp.ne.s32.totalorder %s47, %s49
    %p56 = scmp.eq.s32.totalorder %s18, 1
    %p57 = por %p55, %p56
    %p58 = scmp.ne.s32.totalorder %s49, %s50
    %p59 = scmp.eq.s32.totalorder %s18, 0
    %p60 = por %p58, %p59
    %p61 = scmp.ne.s32.totalorder %s49, %s50
    %p62 = scmp.eq.s32.totalorder %s19, 1
    %p63 = por %p61, %p62
    %p65 = scmp.ne.s32.totalorder %s50, %s64
    %p66 = scmp.eq.s32.totalorder %s19, 0
    %p67 = por %p65, %p66
    %s69 = sadd.s32 %s68, 1
    %p72 = scmp.eq.s32.totalorder %s13, 1
    %p73 = scmp.ne.s32.totalorder %s68, %s70
    %p74 = scmp.eq.s32.totalorder %s13, 0
    %p75 = por %p73, %p74
    %p76 = scmp.ne.s32.totalorder %s68, %s70
    %p77 = scmp.eq.s32.totalorder %s18, 1
    %p78 = por %p76, %p77
    %p79 = scmp.ne.s32.totalorder %s70, %s71
    %p80 = scmp.eq.s32.totalorder %s18, 0
    %p81 = por %p79, %p80
    %p82 = scmp.ne.s32.totalorder %s70, %s71
    %p83 = scmp.eq.s32.totalorder %s19, 1
    %p84 = por %p82, %p83
    %p86 = scmp.ne.s32.totalorder %s71, %s85
    %p87 = scmp.eq.s32.totalorder %s19, 0
    %p88 = por %p86, %p87
    %s90 = sadd.s32 %s89, 1
    %p93 = scmp.eq.s32.totalorder %s13, 1
    %p94 = scmp.ne.s32.totalorder %s89, %s91
    %p95 = scmp.eq.s32.totalorder %s13, 0
    %p96 = por %p94, %p95
    %p97 = scmp.ne.s32.totalorder %s89, %s91
    %p98 = scmp.eq.s32.totalorder %s18, 1
    %p99 = por %p97, %p98
    %p100 = scmp.ne.s32.totalorder %s91, %s92
    %p101 = scmp.eq.s32.totalorder %s18, 0
    %p102 = por %p100, %p101
    %p103 = scmp.ne.s32.totalorder %s91, %s92
    %p104 = scmp.eq.s32.totalorder %s19, 1
    %p105 = por %p103, %p104
    %p107 = scmp.ne.s32.totalorder %s92, %s106
    %p108 = scmp.eq.s32.totalorder %s19, 0
    %p109 = por %p107, %p108
    %s111 = sadd.s32 %s110, 1
    %p114 = scmp.eq.s32.totalorder %s13, 1
    %p115 = scmp.ne.s32.totalorder %s110, %s112
    %p116 = scmp.eq.s32.totalorder %s13, 0
    %p117 = por %p115, %p116
    %p118 = scmp.ne.s32.totalorder %s110, %s112
    %p119 = scmp.eq.s32.totalorder %s18, 1
    %p120 = por %p118, %p119
    %p121 = scmp.ne.s32.totalorder %s112, %s113
    %p122 = scmp.eq.s32.totalorder %s18, 0
    %p123 = por %p121, %p122
    %p124 = scmp.ne.s32.totalorder %s112, %s113
    %p125 = scmp.eq.s32.totalorder %s19, 1
    %p126 = por %p124, %p125
    %p128 = scmp.ne.s32.totalorder %s113, %s127
    %p129 = scmp.eq.s32.totalorder %s19, 0
    %p130 = por %p128, %p129
    %s132 = sadd.s32 %s131, 1
    %p135 = scmp.eq.s32.totalorder %s13, 1
    %p136 = scmp.ne.s32.totalorder %s131, %s133
    %p137 = scmp.eq.s32.totalorder %s13, 0
    %p138 = por %p136, %p137
    %p139 = scmp.ne.s32.totalorder %s131, %s133
    %p140 = scmp.eq.s32.totalorder %s18, 1
    %p141 = por %p139, %p140
    %p142 = scmp.ne.s32.totalorder %s133, %s134
    %p143 = scmp.eq.s32.totalorder %s18, 0
    %p144 = por %p142, %p143
    %p145 = scmp.ne.s32.totalorder %s133, %s134
    %p146 = scmp.eq.s32.totalorder %s19, 1
    %p147 = por %p145, %p146
    %p149 = scmp.ne.s32.totalorder %s134, %s148
    %p150 = scmp.eq.s32.totalorder %s19, 0
    %p151 = por %p149, %p150
    %s153 = sadd.s32 %s152, 1
    %p156 = scmp.eq.s32.totalorder %s13, 1
    %p157 = scmp.ne.s32.totalorder %s152, %s154
    %p158 = scmp.eq.s32.totalorder %s13, 0
    %p159 = por %p157, %p158
    %p160 = scmp.ne.s32.totalorder %s152, %s154
    %p161 = scmp.eq.s32.totalorder %s18, 1
    %p162 = por %p160, %p161
    %p163 = scmp.ne.s32.totalorder %s154, %s155
    %p164 = scmp.eq.s32.totalorder %s18, 0
    %p165 = por %p163, %p164
    %p166 = scmp.ne.s32.totalorder %s154, %s155
    %p167 = scmp.eq.s32.totalorder %s19, 1
    %p168 = por %p166, %p167
    %p170 = scmp.ne.s32.totalorder %s155, %s169
    %p171 = scmp.eq.s32.totalorder %s19, 0
    %p172 = por %p170, %p171
    %s173 = ssub.s32 %s13, %s20
    %p174 = scmp.eq.s32.totalorder %s173, 0
    %s176 = sadd.s32 %s175, 1
    %s177 = scalar_select %p174, %s175, %s176
    %p180 = pneg %p174
    %p181 = scmp.eq.s32.totalorder %s13, 1
    %p182 = por %p180, %p181
    %p183 = scmp.ne.s32.totalorder %s175, %s178
    %p184 = scmp.eq.s32.totalorder %s13, 0
    %p185 = por %p183, %p184
    %p186 = scmp.ne.s32.totalorder %s175, %s178
    %p187 = scmp.eq.s32.totalorder %s18, 1
    %p188 = por %p186, %p187
    %p189 = scmp.ne.s32.totalorder %s178, %s179
    %p190 = scmp.eq.s32.totalorder %s18, 0
    %p191 = por %p189, %p190
    %p192 = scmp.ne.s32.totalorder %s178, %s179
    %p193 = scmp.eq.s32.totalorder %s19, 1
    %p194 = por %p192, %p193
    %p196 = scmp.ne.s32.totalorder %s179, %s195
    %p197 = scmp.eq.s32.totalorder %s19, 0
    %p198 = por %p196, %p197
    %p199 = scmp.le.s32.totalorder 1, %s13
    %p200 = scmp.lt.s32.totalorder %s13, 3
    %p201 = pnand %p199, %p200
    %p202 = pneg %p201
    // Predicated region
    $region9: #{tpu_custom_call.1} parent=5 // pred_check
      _
    $region10: #{tpu_custom_call.1} parent=5 // pred_check_branch
      %204 = sbr.rel (%p201) target = $region12
    $region11: #{tpu_custom_call.1} parent=5 // pred_region
      %s205 = ssub.s32 %s13, 1
      // Predicated region
      $region13: #{tpu_custom_call.1} parent=11 // pred_check
        %p206 = pneg %p60
      $region14: #{tpu_custom_call.1} parent=11 // pred_check_branch
        %208 = sbr.rel (%p206) target = $region16
      $region15: #{tpu_custom_call.1} parent=11 // pred_region
        _
      $region16: #{tpu_custom_call.1} parent=11 // pred_fallthru
        _
      // Predicated region
      $region17: #{tpu_custom_call.1} parent=11 // pred_check
        %p209 = pneg %p81
      $region18: #{tpu_custom_call.1} parent=11 // pred_check_branch
        %211 = sbr.rel (%p209) target = $region20
      $region19: #{tpu_custom_call.1} parent=11 // pred_region
        _
      $region20: #{tpu_custom_call.1} parent=11 // pred_fallthru
        _
      // Predicated region
      $region21: #{tpu_custom_call.1} parent=11 // pred_check
        %p212 = pneg %p102
      $region22: #{tpu_custom_call.1} parent=11 // pred_check_branch
        %214 = sbr.rel (%p212) target = $region24
      $region23: #{tpu_custom_call.1} parent=11 // pred_region
        _
      $region24: #{tpu_custom_call.1} parent=11 // pred_fallthru
        _
      // Predicated region
      $region25: #{tpu_custom_call.1} parent=11 // pred_check
        %p215 = pneg %p123
      $region26: #{tpu_custom_call.1} parent=11 // pred_check_branch
        %217 = sbr.rel (%p215) target = $region28
      $region27: #{tpu_custom_call.1} parent=11 // pred_region
        _
      $region28: #{tpu_custom_call.1} parent=11 // pred_fallthru
        _
      // Predicated region
      $region29: #{tpu_custom_call.1} parent=11 // pred_check
        %p218 = pneg %p144
      $region30: #{tpu_custom_call.1} parent=11 // pred_check_branch
        %220 = sbr.rel (%p218) target = $region32
      $region31: #{tpu_custom_call.1} parent=11 // pred_region
        _
      $region32: #{tpu_custom_call.1} parent=11 // pred_fallthru
        _
      // Predicated region
      $region33: #{tpu_custom_call.1} parent=11 // pred_check
        %p221 = pneg %p165
      $region34: #{tpu_custom_call.1} parent=11 // pred_check_branch
        %223 = sbr.rel (%p221) target = $region36
      $region35: #{tpu_custom_call.1} parent=11 // pred_region
        _
      $region36: #{tpu_custom_call.1} parent=11 // pred_fallthru
        _
    $region12: #{tpu_custom_call.1} parent=5 // pred_fallthru
      _
    %p224 = scmp.lt.s32.totalorder %s13, 2
    // Predicated region
    $region37: #{tpu_custom_call.1} parent=5 // pred_check
      %p225 = pneg %p224
    $region38: #{tpu_custom_call.1} parent=5 // pred_check_branch
      %227 = sbr.rel (%p225) target = $region40
    $region39: #{tpu_custom_call.1} parent=5 // pred_region
      // Predicated region
      $region41: #{tpu_custom_call.1} parent=39 // pred_check
        %p228 = pneg %p33
      $region42: #{tpu_custom_call.1} parent=39 // pred_check_branch
        %230 = sbr.rel (%p228) target = $region44
      $region43: #{tpu_custom_call.1} parent=39 // pred_region
        %s231 = smul.u32 64, %s13
        %p232 = scmp.lt.s32.totalorder %s231, 127
        %s233 = scalar_select %p232, %s231, 127
        %s234 = smul.addr %s233, 8
        %s235 = scalar_lea.vmem %s0, %s234
        %s236 = smul.u32 64, %s13
      $region44: #{tpu_custom_call.1} parent=39 // pred_fallthru
        _
    $region40: #{tpu_custom_call.1} parent=5 // pred_fallthru
      _
    %p237 = scmp.le.s32.totalorder 1, %s13
    %p238 = scmp.lt.s32.totalorder %s13, 3
    %p239 = pnand %p237, %p238
    %p240 = pneg %p239
    // Predicated region
    $region45: #{tpu_custom_call.1} parent=5 // pred_check
      _
    $region46: #{tpu_custom_call.1} parent=5 // pred_check_branch
      %242 = sbr.rel (%p239) target = $region48
    $region47: #{tpu_custom_call.1} parent=5 // pred_region
      %s243 = ssub.s32 %s13, 1
      %s244 = smul.u32 64, %s18
      %p245 = scmp.lt.s32.totalorder %s244, 127
      %s246 = scalar_select %p245, %s244, 127
      %s247 = smul.addr %s246, 8
      %s248 = scalar_lea.vmem %s0, %s247
      %p249 = pneg %p39
      %p250 = pneg %p36
      %p251 = pneg %p60
      %p252 = pneg %p57
      %p253 = pneg %p81
      %p254 = pneg %p78
      %p255 = pneg %p102
      %p256 = pneg %p99
      %p257 = pneg %p123
      %p258 = pneg %p120
      %p259 = pneg %p144
      %p260 = pneg %p141
      %p261 = pneg %p165
      %p262 = pneg %p162
      %p263 = pneg %p191
      %p264 = pneg %p188
      %s265 = smul.u32 64, %s18
      %p266 = scmp.lt.s32.totalorder %s265, 127
      %s267 = scalar_select %p266, %s265, 127
      %s268 = smul.addr %s267, 8
      %s269 = scalar_lea.vmem %s7, %s268
      %s270 = smul.u32 64, %s18
      %p271 = scmp.lt.s32.totalorder %s270, 127
      %s272 = scalar_select %p271, %s270, 127
      %s273 = smul.addr %s272, 8
      %s274 = scalar_lea.vmem %s0, %s273
      %s275 = smul.u32 64, %s18
      %s276 = smul.u32 64, %s18
      %p277 = scmp.lt.s32.totalorder %s276, 127
      %s278 = scalar_select %p277, %s276, 127
      %s279 = smul.addr %s278, 8
      %s280 = scalar_lea.vmem %s7, %s279
      %s281 = smul.u32 64, %s18
      %v283 = vld [vmem:[%s274] sm:$0xff]
      %v284 = vld [vmem:[%s274 + $0x8] sm:$0xff]
      %v285 = vld [vmem:[%s274 + $0x10] sm:$0xff]
      %v286 = vld [vmem:[%s274 + $0x18] sm:$0xff]
      %v287 = vld [vmem:[%s274 + $0x20] sm:$0xff]
      %v288 = vld [vmem:[%s274 + $0x28] sm:$0xff]
      %v289 = vld [vmem:[%s274 + $0x30] sm:$0xff]
      %v290 = vld [vmem:[%s274 + $0x38] sm:$0xff]
      %v291 = vld [vmem:[%s274 + $0x40] sm:$0xff]
      %v292 = vld [vmem:[%s274 + $0x48] sm:$0xff]
      %v293 = vld [vmem:[%s274 + $0x50] sm:$0xff]
      %v294 = vld [vmem:[%s274 + $0x58] sm:$0xff]
      %v295 = vld [vmem:[%s274 + $0x60] sm:$0xff]
      %v296 = vld [vmem:[%s274 + $0x68] sm:$0xff]
      %v297 = vld [vmem:[%s274 + $0x70] sm:$0xff]
      %v298 = vld [vmem:[%s274 + $0x78] sm:$0xff]
      %v299 = vld [vmem:[%s274 + $0x80] sm:$0xff]
      %v300 = vld [vmem:[%s274 + $0x88] sm:$0xff]
      %v301 = vld [vmem:[%s274 + $0x90] sm:$0xff]
      %v302 = vld [vmem:[%s274 + $0x98] sm:$0xff]
      %v303 = vld [vmem:[%s274 + $0xa0] sm:$0xff]
      %v304 = vld [vmem:[%s274 + $0xa8] sm:$0xff]
      %v305 = vld [vmem:[%s274 + $0xb0] sm:$0xff]
      %v306 = vld [vmem:[%s274 + $0xb8] sm:$0xff]
      %v307 = vld [vmem:[%s274 + $0xc0] sm:$0xff]
      %v308 = vld [vmem:[%s274 + $0xc8] sm:$0xff]
      %v309 = vld [vmem:[%s274 + $0xd0] sm:$0xff]
      %v310 = vld [vmem:[%s274 + $0xd8] sm:$0xff]
      %v311 = vld [vmem:[%s274 + $0xe0] sm:$0xff]
      %v312 = vld [vmem:[%s274 + $0xe8] sm:$0xff]
      %v313 = vld [vmem:[%s274 + $0xf0] sm:$0xff]
      %v314 = vld [vmem:[%s274 + $0xf8] sm:$0xff]
      %v315 = vld [vmem:[%s274 + $0x100] sm:$0xff]
      %v316 = vld [vmem:[%s274 + $0x108] sm:$0xff]
      %v317 = vld [vmem:[%s274 + $0x110] sm:$0xff]
      %v318 = vld [vmem:[%s274 + $0x118] sm:$0xff]
      %v319 = vld [vmem:[%s274 + $0x120] sm:$0xff]
      %v320 = vld [vmem:[%s274 + $0x128] sm:$0xff]
      %v321 = vld [vmem:[%s274 + $0x130] sm:$0xff]
      %v322 = vld [vmem:[%s274 + $0x138] sm:$0xff]
      %v323 = vld [vmem:[%s274 + $0x140] sm:$0xff]
      %v324 = vld [vmem:[%s274 + $0x148] sm:$0xff]
      %v325 = vld [vmem:[%s274 + $0x150] sm:$0xff]
      %v326 = vld [vmem:[%s274 + $0x158] sm:$0xff]
      %v327 = vld [vmem:[%s274 + $0x160] sm:$0xff]
      %v328 = vld [vmem:[%s274 + $0x168] sm:$0xff]
      %v329 = vld [vmem:[%s274 + $0x170] sm:$0xff]
      %v330 = vld [vmem:[%s274 + $0x178] sm:$0xff]
      %v331 = vld [vmem:[%s274 + $0x180] sm:$0xff]
      %v332 = vld [vmem:[%s274 + $0x188] sm:$0xff]
      %v333 = vld [vmem:[%s274 + $0x190] sm:$0xff]
      %v334 = vld [vmem:[%s274 + $0x198] sm:$0xff]
      %v335 = vld [vmem:[%s274 + $0x1a0] sm:$0xff]
      %v336 = vld [vmem:[%s274 + $0x1a8] sm:$0xff]
      %v337 = vld [vmem:[%s274 + $0x1b0] sm:$0xff]
      %v338 = vld [vmem:[%s274 + $0x1b8] sm:$0xff]
      %v339 = vld [vmem:[%s274 + $0x1c0] sm:$0xff]
      %v340 = vld [vmem:[%s274 + $0x1c8] sm:$0xff]
      %v341 = vld [vmem:[%s274 + $0x1d0] sm:$0xff]
      %v342 = vld [vmem:[%s274 + $0x1d8] sm:$0xff]
      %v343 = vld [vmem:[%s274 + $0x1e0] sm:$0xff]
      %v344 = vld [vmem:[%s274 + $0x1e8] sm:$0xff]
      %v345 = vld [vmem:[%s274 + $0x1f0] sm:$0xff]
      %v346 = vld [vmem:[%s274 + $0x1f8] sm:$0xff]
      %v347 = vld [vmem:[%s1] sm:$0xff]
      %v348 = vld [vmem:[%s2] sm:$0x1]
      %v350 = vlaneseq
      %v351 = vshrl.u32 %v350, 7
      %v352 = vsub.s32 0, %v351
      %v353 = vrot.slane %v348, %v352
      %vm355 = vcmask 64512
      %v357 = vsel %vm355, %v283, 0
      %v360 = vsel %vm355, %v284, 0
      %v363 = vsel %vm355, %v285, 0
      %v366 = vsel %vm355, %v286, 0
      %v369 = vsel %vm355, %v287, 0
      %v372 = vsel %vm355, %v288, 0
      %v375 = vsel %vm355, %v289, 0
      %v378 = vsel %vm355, %v290, 0
      %v381 = vsel %vm355, %v291, 0
      %v384 = vsel %vm355, %v292, 0
      %v387 = vsel %vm355, %v293, 0
      %v390 = vsel %vm355, %v294, 0
      %v393 = vsel %vm355, %v295, 0
      %v396 = vsel %vm355, %v296, 0
      %v399 = vsel %vm355, %v297, 0
      %v402 = vsel %vm355, %v298, 0
      %v405 = vsel %vm355, %v299, 0
      %v408 = vsel %vm355, %v300, 0
      %v411 = vsel %vm355, %v301, 0
      %v414 = vsel %vm355, %v302, 0
      %v417 = vsel %vm355, %v303, 0
      %v420 = vsel %vm355, %v304, 0
      %v423 = vsel %vm355, %v305, 0
      %v426 = vsel %vm355, %v306, 0
      %v429 = vsel %vm355, %v307, 0
      %v432 = vsel %vm355, %v308, 0
      %v435 = vsel %vm355, %v309, 0
      %v438 = vsel %vm355, %v310, 0
      %v441 = vsel %vm355, %v311, 0
      %v444 = vsel %vm355, %v312, 0
      %v447 = vsel %vm355, %v313, 0
      %v450 = vsel %vm355, %v314, 0
      %v453 = vsel %vm355, %v315, 0
      %v456 = vsel %vm355, %v316, 0
      %v459 = vsel %vm355, %v317, 0
      %v462 = vsel %vm355, %v318, 0
      %v465 = vsel %vm355, %v319, 0
      %v468 = vsel %vm355, %v320, 0
      %v471 = vsel %vm355, %v321, 0
      %v474 = vsel %vm355, %v322, 0
      %v477 = vsel %vm355, %v323, 0
      %v480 = vsel %vm355, %v324, 0
      %v483 = vsel %vm355, %v325, 0
      %v486 = vsel %vm355, %v326, 0
      %v489 = vsel %vm355, %v327, 0
      %v492 = vsel %vm355, %v328, 0
      %v495 = vsel %vm355, %v329, 0
      %v498 = vsel %vm355, %v330, 0
      %v501 = vsel %vm355, %v331, 0
      %v504 = vsel %vm355, %v332, 0
      %v507 = vsel %vm355, %v333, 0
      %v510 = vsel %vm355, %v334, 0
      %v513 = vsel %vm355, %v335, 0
      %v516 = vsel %vm355, %v336, 0
      %v519 = vsel %vm355, %v337, 0
      %v522 = vsel %vm355, %v338, 0
      %v525 = vsel %vm355, %v339, 0
      %v528 = vsel %vm355, %v340, 0
      %v531 = vsel %vm355, %v341, 0
      %v534 = vsel %vm355, %v342, 0
      %v537 = vsel %vm355, %v343, 0
      %v540 = vsel %vm355, %v344, 0
      %v543 = vsel %vm355, %v345, 0
      %v546 = vsel %vm355, %v346, 0
      %548 = vmatprep.subr.mxu0 0.0
      %549 = vmatpush1.msra.mxu0 %v347
      %550 = vmatprep.subr.mxu0 0.0
      %551 = vmatpush1.msra.mxu0 0.0
      %552 = vmatprep.subr.mxu0 0.0
      %553 = vmatpush1.msra.mxu0 0.0
      %554 = vmatprep.subr.mxu0 0.0
      %555 = vmatpush1.msra.mxu0 0.0
      %556 = vmatprep.subr.mxu0 0.0
      %557 = vmatpush1.msra.mxu0 0.0
      %558 = vmatprep.subr.mxu0 0.0
      %559 = vmatpush1.msra.mxu0 0.0
      %560 = vmatprep.subr.mxu0 0.0
      %561 = vmatpush1.msra.mxu0 0.0
      %562 = vmatprep.subr.mxu0 0.0
      %563 = vmatpush1.msra.mxu0 0.0
      %564 = vmatprep.subr.mxu0 0.0
      %565 = vmatpush1.msra.mxu0 0.0
      %566 = vmatprep.subr.mxu0 0.0
      %567 = vmatpush1.msra.mxu0 0.0
      %568 = vmatprep.subr.mxu0 0.0
      %569 = vmatpush1.msra.mxu0 0.0
      %570 = vmatprep.subr.mxu0 0.0
      %571 = vmatpush1.msra.mxu0 0.0
      %572 = vmatprep.subr.mxu0 0.0
      %573 = vmatpush1.msra.mxu0 0.0
      %574 = vmatprep.subr.mxu0 0.0
      %575 = vmatpush1.msra.mxu0 0.0
      %576 = vmatprep.subr.mxu0 0.0
      %577 = vmatpush1.msra.mxu0 0.0
      %578 = vmatprep.subr.mxu0 0.0
      %579 = vmatpush1.msra.mxu0 0.0
      %580 = vmatprep.subr.mxu0 0.0
      %581 = vmatpush1.msra.mxu0 0.0
      %582 = vmatprep.subr.mxu0 0.0
      %583 = vmatpush1.msra.mxu0 0.0
      %584 = vmatprep.subr.mxu0 0.0
      %585 = vmatpush1.msra.mxu0 0.0
      %586 = vmatprep.subr.mxu0 0.0
      %587 = vmatpush1.msra.mxu0 0.0
      %588 = vmatprep.subr.mxu0 0.0
      %589 = vmatpush1.msra.mxu0 0.0
      %590 = vmatprep.subr.mxu0 0.0
      %591 = vmatpush1.msra.mxu0 0.0
      %592 = vmatprep.subr.mxu0 0.0
      %593 = vmatpush1.msra.mxu0 0.0
      %594 = vmatprep.subr.mxu0 0.0
      %595 = vmatpush1.msra.mxu0 0.0
      %596 = vmatprep.subr.mxu0 0.0
      %597 = vmatpush1.msra.mxu0 0.0
      %598 = vmatprep.subr.mxu0 0.0
      %599 = vmatpush1.msra.mxu0 0.0
      %600 = vmatprep.subr.mxu0 0.0
      %601 = vmatpush1.msra.mxu0 0.0
      %602 = vmatprep.subr.mxu0 0.0
      %603 = vmatpush1.msra.mxu0 0.0
      %604 = vmatprep.subr.mxu0 0.0
      %605 = vmatpush1.msra.mxu0 0.0
      %606 = vmatprep.subr.mxu0 0.0
      %607 = vmatpush1.msra.mxu0 0.0
      %608 = vmatprep.subr.mxu0 0.0
      %609 = vmatpush1.msra.mxu0 0.0
      %610 = vmatprep.subr.mxu0 0.0
      %611 = vmatpush1.msra.mxu0 0.0
      %612 = vmatprep.mubr.f32.mxu0 0.0
      %613 = vmatmul.mubr.f32.gmra.mrb[0].mxu0 %v357
      %v614 = vpop.f32.mrb[0].mxu0
      %v615 = vadd.f32 %v353, %v614
      %v616 = vpop.f32.mrb[0].mxu0
      %617 = vmatprep.mubr.f32.mxu0 0.0
      %618 = vmatmul.mubr.f32.gmra.mrb[0].mxu0 %v360
      %v619 = vpop.f32.mrb[0].mxu0
      %v620 = vadd.f32 %v353, %v619
      %v621 = vpop.f32.mrb[0].mxu0
      %622 = vmatprep.mubr.f32.mxu0 0.0
      %623 = vmatmul.mubr.f32.gmra.mrb[0].mxu0 %v363
      %v624 = vpop.f32.mrb[0].mxu0
      %v625 = vadd.f32 %v353, %v624
      %v626 = vpop.f32.mrb[0].mxu0
      %627 = vmatprep.mubr.f32.mxu0 0.0
      %628 = vmatmul.mubr.f32.gmra.mrb[0].mxu0 %v366
      %v629 = vpop.f32.mrb[0].mxu0
      %v630 = vadd.f32 %v353, %v629
      %v631 = vpop.f32.mrb[0].mxu0
      %632 = vmatprep.mubr.f32.mxu0 0.0
      %633 = vmatmul.mubr.f32.gmra.mrb[0].mxu0 %v369
      %v634 = vpop.f32.mrb[0].mxu0
      %v635 = vadd.f32 %v353, %v634
      %v636 = vpop.f32.mrb[0].mxu0
      %637 = vmatprep.mubr.f32.mxu0 0.0
      %638 = vmatmul.mubr.f32.gmra.mrb[0].mxu0 %v372
      %v639 = vpop.f32.mrb[0].mxu0
      %v640 = vadd.f32 %v353, %v639
      %v641 = vpop.f32.mrb[0].mxu0
      %642 = vmatprep.mubr.f32.mxu0 0.0
      %643 = vmatmul.mubr.f32.gmra.mrb[0].mxu0 %v375
      %v644 = vpop.f32.mrb[0].mxu0
      %v645 = vadd.f32 %v353, %v644
      %v646 = vpop.f32.mrb[0].mxu0
      %647 = vmatprep.mubr.f32.mxu0 0.0
      %648 = vmatmul.mubr.f32.gmra.mrb[0].mxu0 %v378
      %v649 = vpop.f32.mrb[0].mxu0
      %v650 = vadd.f32 %v353, %v649
      %v651 = vpop.f32.mrb[0].mxu0
      %652 = vmatprep.mubr.f32.mxu0 0.0
      %653 = vmatmul.mubr.f32.gmra.mrb[0].mxu0 %v381
      %v654 = vpop.f32.mrb[0].mxu0
      %v655 = vadd.f32 %v353, %v654
      %v656 = vpop.f32.mrb[0].mxu0
      %657 = vmatprep.mubr.f32.mxu0 0.0
      %658 = vmatmul.mubr.f32.gmra.mrb[0].mxu0 %v384
      %v659 = vpop.f32.mrb[0].mxu0
      %v660 = vadd.f32 %v353, %v659
      %v661 = vpop.f32.mrb[0].mxu0
      %662 = vmatprep.mubr.f32.mxu0 0.0
      %663 = vmatmul.mubr.f32.gmra.mrb[0].mxu0 %v387
      %v664 = vpop.f32.mrb[0].mxu0
      %v665 = vadd.f32 %v353, %v664
      %v666 = vpop.f32.mrb[0].mxu0
      %667 = vmatprep.mubr.f32.mxu0 0.0
      %668 = vmatmul.mubr.f32.gmra.mrb[0].mxu0 %v390
      %v669 = vpop.f32.mrb[0].mxu0
      %v670 = vadd.f32 %v353, %v669
      %v671 = vpop.f32.mrb[0].mxu0
      %672 = vmatprep.mubr.f32.mxu0 0.0
      %673 = vmatmul.mubr.f32.gmra.mrb[0].mxu0 %v393
      %v674 = vpop.f32.mrb[0].mxu0
      %v675 = vadd.f32 %v353, %v674
      %v676 = vpop.f32.mrb[0].mxu0
      %677 = vmatprep.mubr.f32.mxu0 0.0
      %678 = vmatmul.mubr.f32.gmra.mrb[0].mxu0 %v396
      %v679 = vpop.f32.mrb[0].mxu0
      %v680 = vadd.f32 %v353, %v679
      %v681 = vpop.f32.mrb[0].mxu0
      %682 = vmatprep.mubr.f32.mxu0 0.0
      %683 = vmatmul.mubr.f32.gmra.mrb[0].mxu0 %v399
      %v684 = vpop.f32.mrb[0].mxu0
      %v685 = vadd.f32 %v353, %v684
      %v686 = vpop.f32.mrb[0].mxu0
      %687 = vmatprep.mubr.f32.mxu0 0.0
      %688 = vmatmul.mubr.f32.gmra.mrb[0].mxu0 %v402
      %v689 = vpop.f32.mrb[0].mxu0
      %v690 = vadd.f32 %v353, %v689
      %v691 = vpop.f32.mrb[0].mxu0
      %692 = vmatprep.mubr.f32.mxu0 0.0
      %693 = vmatmul.mubr.f32.gmra.mrb[0].mxu0 %v405
      %v694 = vpop.f32.mrb[0].mxu0
      %v695 = vadd.f32 %v353, %v694
      %v696 = vpop.f32.mrb[0].mxu0
      %697 = vmatprep.mubr.f32.mxu0 0.0
      %698 = vmatmul.mubr.f32.gmra.mrb[0].mxu0 %v408
      %v699 = vpop.f32.mrb[0].mxu0
      %v700 = vadd.f32 %v353, %v699
      %v701 = vpop.f32.mrb[0].mxu0
      %702 = vmatprep.mubr.f32.mxu0 0.0
      %703 = vmatmul.mubr.f32.gmra.mrb[0].mxu0 %v411
      %v704 = vpop.f32.mrb[0].mxu0
      %v705 = vadd.f32 %v353, %v704
      %v706 = vpop.f32.mrb[0].mxu0
      %707 = vmatprep.mubr.f32.mxu0 0.0
      %708 = vmatmul.mubr.f32.gmra.mrb[0].mxu0 %v414
      %v709 = vpop.f32.mrb[0].mxu0
      %v710 = vadd.f32 %v353, %v709
      %v711 = vpop.f32.mrb[0].mxu0
      %712 = vmatprep.mubr.f32.mxu0 0.0
      %713 = vmatmul.mubr.f32.gmra.mrb[0].mxu0 %v417
      %v714 = vpop.f32.mrb[0].mxu0
      %v715 = vadd.f32 %v353, %v714
      %v716 = vpop.f32.mrb[0].mxu0
      %717 = vmatprep.mubr.f32.mxu0 0.0
      %718 = vmatmul.mubr.f32.gmra.mrb[0].mxu0 %v420
      %v719 = vpop.f32.mrb[0].mxu0
      %v720 = vadd.f32 %v353, %v719
      %v721 = vpop.f32.mrb[0].mxu0
      %722 = vmatprep.mubr.f32.mxu0 0.0
      %723 = vmatmul.mubr.f32.gmra.mrb[0].mxu0 %v423
      %v724 = vpop.f32.mrb[0].mxu0
      %v725 = vadd.f32 %v353, %v724
      %v726 = vpop.f32.mrb[0].mxu0
      %727 = vmatprep.mubr.f32.mxu0 0.0
      %728 = vmatmul.mubr.f32.gmra.mrb[0].mxu0 %v426
      %v729 = vpop.f32.mrb[0].mxu0
      %v730 = vadd.f32 %v353, %v729
      %v731 = vpop.f32.mrb[0].mxu0
      %732 = vmatprep.mubr.f32.mxu0 0.0
      %733 = vmatmul.mubr.f32.gmra.mrb[0].mxu0 %v429
      %v734 = vpop.f32.mrb[0].mxu0
      %v735 = vadd.f32 %v353, %v734
      %v736 = vpop.f32.mrb[0].mxu0
      %737 = vmatprep.mubr.f32.mxu0 0.0
      %738 = vmatmul.mubr.f32.gmra.mrb[0].mxu0 %v432
      %v739 = vpop.f32.mrb[0].mxu0
      %v740 = vadd.f32 %v353, %v739
      %v741 = vpop.f32.mrb[0].mxu0
      %742 = vmatprep.mubr.f32.mxu0 0.0
      %743 = vmatmul.mubr.f32.gmra.mrb[0].mxu0 %v435
      %v744 = vpop.f32.mrb[0].mxu0
      %v745 = vadd.f32 %v353, %v744
      %v746 = vpop.f32.mrb[0].mxu0
      %747 = vmatprep.mubr.f32.mxu0 0.0
      %748 = vmatmul.mubr.f32.gmra.mrb[0].mxu0 %v438
      %v749 = vpop.f32.mrb[0].mxu0
      %v750 = vadd.f32 %v353, %v749
      %v751 = vpop.f32.mrb[0].mxu0
      %752 = vmatprep.mubr.f32.mxu0 0.0
      %753 = vmatmul.mubr.f32.gmra.mrb[0].mxu0 %v441
      %v754 = vpop.f32.mrb[0].mxu0
      %v755 = vadd.f32 %v353, %v754
      %v756 = vpop.f32.mrb[0].mxu0
      %757 = vmatprep.mubr.f32.mxu0 0.0
      %758 = vmatmul.mubr.f32.gmra.mrb[0].mxu0 %v444
      %v759 = vpop.f32.mrb[0].mxu0
      %v760 = vadd.f32 %v353, %v759
      %v761 = vpop.f32.mrb[0].mxu0
      %762 = vmatprep.mubr.f32.mxu0 0.0
      %763 = vmatmul.mubr.f32.gmra.mrb[0].mxu0 %v447
      %v764 = vpop.f32.mrb[0].mxu0
      %v765 = vadd.f32 %v353, %v764
      %v766 = vpop.f32.mrb[0].mxu0
      %767 = vmatprep.mubr.f32.mxu0 0.0
      %768 = vmatmul.mubr.f32.gmra.mrb[0].mxu0 %v450
      %v769 = vpop.f32.mrb[0].mxu0
      %v770 = vadd.f32 %v353, %v769
      %v771 = vpop.f32.mrb[0].mxu0
      %772 = vmatprep.mubr.f32.mxu0 0.0
      %773 = vmatmul.mubr.f32.gmra.mrb[0].mxu0 %v453
      %v774 = vpop.f32.mrb[0].mxu0
      %v775 = vadd.f32 %v353, %v774
      %v776 = vpop.f32.mrb[0].mxu0
      %777 = vmatprep.mubr.f32.mxu0 0.0
      %778 = vmatmul.mubr.f32.gmra.mrb[0].mxu0 %v456
      %v779 = vpop.f32.mrb[0].mxu0
      %v780 = vadd.f32 %v353, %v779
      %v781 = vpop.f32.mrb[0].mxu0
      %782 = vmatprep.mubr.f32.mxu0 0.0
      %783 = vmatmul.mubr.f32.gmra.mrb[0].mxu0 %v459
      %v784 = vpop.f32.mrb[0].mxu0
      %v785 = vadd.f32 %v353, %v784
      %v786 = vpop.f32.mrb[0].mxu0
      %787 = vmatprep.mubr.f32.mxu0 0.0
      %788 = vmatmul.mubr.f32.gmra.mrb[0].mxu0 %v462
      %v789 = vpop.f32.mrb[0].mxu0
      %v790 = vadd.f32 %v353, %v789
      %v791 = vpop.f32.mrb[0].mxu0
      %792 = vmatprep.mubr.f32.mxu0 0.0
      %793 = vmatmul.mubr.f32.gmra.mrb[0].mxu0 %v465
      %v794 = vpop.f32.mrb[0].mxu0
      %v795 = vadd.f32 %v353, %v794
      %v796 = vpop.f32.mrb[0].mxu0
      %797 = vmatprep.mubr.f32.mxu0 0.0
      %798 = vmatmul.mubr.f32.gmra.mrb[0].mxu0 %v468
      %v799 = vpop.f32.mrb[0].mxu0
      %v800 = vadd.f32 %v353, %v799
      %v801 = vpop.f32.mrb[0].mxu0
      %802 = vmatprep.mubr.f32.mxu0 0.0
      %803 = vmatmul.mubr.f32.gmra.mrb[0].mxu0 %v471
      %v804 = vpop.f32.mrb[0].mxu0
      %v805 = vadd.f32 %v353, %v804
      %v806 = vpop.f32.mrb[0].mxu0
      %807 = vmatprep.mubr.f32.mxu0 0.0
      %808 = vmatmul.mubr.f32.gmra.mrb[0].mxu0 %v474
      %v809 = vpop.f32.mrb[0].mxu0
      %v810 = vadd.f32 %v353, %v809
      %v811 = vpop.f32.mrb[0].mxu0
      %812 = vmatprep.mubr.f32.mxu0 0.0
      %813 = vmatmul.mubr.f32.gmra.mrb[0].mxu0 %v477
      %v814 = vpop.f32.mrb[0].mxu0
      %v815 = vadd.f32 %v353, %v814
      %v816 = vpop.f32.mrb[0].mxu0
      %817 = vmatprep.mubr.f32.mxu0 0.0
      %818 = vmatmul.mubr.f32.gmra.mrb[0].mxu0 %v480
      %v819 = vpop.f32.mrb[0].mxu0
      %v820 = vadd.f32 %v353, %v819
      %v821 = vpop.f32.mrb[0].mxu0
      %822 = vmatprep.mubr.f32.mxu0 0.0
      %823 = vmatmul.mubr.f32.gmra.mrb[0].mxu0 %v483
      %v824 = vpop.f32.mrb[0].mxu0
      %v825 = vadd.f32 %v353, %v824
      %v826 = vpop.f32.mrb[0].mxu0
      %827 = vmatprep.mubr.f32.mxu0 0.0
      %828 = vmatmul.mubr.f32.gmra.mrb[0].mxu0 %v486
      %v829 = vpop.f32.mrb[0].mxu0
      %v830 = vadd.f32 %v353, %v829
      %v831 = vpop.f32.mrb[0].mxu0
      %832 = vmatprep.mubr.f32.mxu0 0.0
      %833 = vmatmul.mubr.f32.gmra.mrb[0].mxu0 %v489
      %v834 = vpop.f32.mrb[0].mxu0
      %v835 = vadd.f32 %v353, %v834
      %v836 = vpop.f32.mrb[0].mxu0
      %837 = vmatprep.mubr.f32.mxu0 0.0
      %838 = vmatmul.mubr.f32.gmra.mrb[0].mxu0 %v492
      %v839 = vpop.f32.mrb[0].mxu0
      %v840 = vadd.f32 %v353, %v839
      %v841 = vpop.f32.mrb[0].mxu0
      %842 = vmatprep.mubr.f32.mxu0 0.0
      %843 = vmatmul.mubr.f32.gmra.mrb[0].mxu0 %v495
      %v844 = vpop.f32.mrb[0].mxu0
      %v845 = vadd.f32 %v353, %v844
      %v846 = vpop.f32.mrb[0].mxu0
      %847 = vmatprep.mubr.f32.mxu0 0.0
      %848 = vmatmul.mubr.f32.gmra.mrb[0].mxu0 %v498
      %v849 = vpop.f32.mrb[0].mxu0
      %v850 = vadd.f32 %v353, %v849
      %v851 = vpop.f32.mrb[0].mxu0
      %852 = vmatprep.mubr.f32.mxu0 0.0
      %853 = vmatmul.mubr.f32.gmra.mrb[0].mxu0 %v501
      %v854 = vpop.f32.mrb[0].mxu0
      %v855 = vadd.f32 %v353, %v854
      %v856 = vpop.f32.mrb[0].mxu0
      %857 = vmatprep.mubr.f32.mxu0 0.0
      %858 = vmatmul.mubr.f32.gmra.mrb[0].mxu0 %v504
      %v859 = vpop.f32.mrb[0].mxu0
      %v860 = vadd.f32 %v353, %v859
      %v861 = vpop.f32.mrb[0].mxu0
      %862 = vmatprep.mubr.f32.mxu0 0.0
      %863 = vmatmul.mubr.f32.gmra.mrb[0].mxu0 %v507
      %v864 = vpop.f32.mrb[0].mxu0
      %v865 = vadd.f32 %v353, %v864
      %v866 = vpop.f32.mrb[0].mxu0
      %867 = vmatprep.mubr.f32.mxu0 0.0
      %868 = vmatmul.mubr.f32.gmra.mrb[0].mxu0 %v510
      %v869 = vpop.f32.mrb[0].mxu0
      %v870 = vadd.f32 %v353, %v869
      %v871 = vpop.f32.mrb[0].mxu0
      %872 = vmatprep.mubr.f32.mxu0 0.0
      %873 = vmatmul.mubr.f32.gmra.mrb[0].mxu0 %v513
      %v874 = vpop.f32.mrb[0].mxu0
      %v875 = vadd.f32 %v353, %v874
      %v876 = vpop.f32.mrb[0].mxu0
      %877 = vmatprep.mubr.f32.mxu0 0.0
      %878 = vmatmul.mubr.f32.gmra.mrb[0].mxu0 %v516
      %v879 = vpop.f32.mrb[0].mxu0
      %v880 = vadd.f32 %v353, %v879
      %v881 = vpop.f32.mrb[0].mxu0
      %882 = vmatprep.mubr.f32.mxu0 0.0
      %883 = vmatmul.mubr.f32.gmra.mrb[0].mxu0 %v519
      %v884 = vpop.f32.mrb[0].mxu0
      %v885 = vadd.f32 %v353, %v884
      %v886 = vpop.f32.mrb[0].mxu0
      %887 = vmatprep.mubr.f32.mxu0 0.0
      %888 = vmatmul.mubr.f32.gmra.mrb[0].mxu0 %v522
      %v889 = vpop.f32.mrb[0].mxu0
      %v890 = vadd.f32 %v353, %v889
      %v891 = vpop.f32.mrb[0].mxu0
      %892 = vmatprep.mubr.f32.mxu0 0.0
      %893 = vmatmul.mubr.f32.gmra.mrb[0].mxu0 %v525
      %v894 = vpop.f32.mrb[0].mxu0
      %v895 = vadd.f32 %v353, %v894
      %v896 = vpop.f32.mrb[0].mxu0
      %897 = vmatprep.mubr.f32.mxu0 0.0
      %898 = vmatmul.mubr.f32.gmra.mrb[0].mxu0 %v528
      %v899 = vpop.f32.mrb[0].mxu0
      %v900 = vadd.f32 %v353, %v899
      %v901 = vpop.f32.mrb[0].mxu0
      %902 = vmatprep.mubr.f32.mxu0 0.0
      %903 = vmatmul.mubr.f32.gmra.mrb[0].mxu0 %v531
      %v904 = vpop.f32.mrb[0].mxu0
      %v905 = vadd.f32 %v353, %v904
      %v906 = vpop.f32.mrb[0].mxu0
      %907 = vmatprep.mubr.f32.mxu0 0.0
      %908 = vmatmul.mubr.f32.gmra.mrb[0].mxu0 %v534
      %v909 = vpop.f32.mrb[0].mxu0
      %v910 = vadd.f32 %v353, %v909
      %v911 = vpop.f32.mrb[0].mxu0
      %912 = vmatprep.mubr.f32.mxu0 0.0
      %913 = vmatmul.mubr.f32.gmra.mrb[0].mxu0 %v537
      %v914 = vpop.f32.mrb[0].mxu0
      %v915 = vadd.f32 %v353, %v914
      %v916 = vpop.f32.mrb[0].mxu0
      %917 = vmatprep.mubr.f32.mxu0 0.0
      %918 = vmatmul.mubr.f32.gmra.mrb[0].mxu0 %v540
      %v919 = vpop.f32.mrb[0].mxu0
      %v920 = vadd.f32 %v353, %v919
      %v921 = vpop.f32.mrb[0].mxu0
      %922 = vmatprep.mubr.f32.mxu0 0.0
      %923 = vmatmul.mubr.f32.gmra.mrb[0].mxu0 %v543
      %v924 = vpop.f32.mrb[0].mxu0
      %v925 = vadd.f32 %v353, %v924
      %v926 = vpop.f32.mrb[0].mxu0
      %927 = vmatprep.mubr.f32.mxu0 0.0
      %928 = vmatmul.mubr.f32.gmra.mrb[0].mxu0 %v546
      %v929 = vpop.f32.mrb[0].mxu0
      %v930 = vadd.f32 %v353, %v929
      %v931 = vpop.f32.mrb[0].mxu0
      %932 = vdwg.mxu0
      %v933 = vmax.f32 %v615, 0.0
      %v934 = vmax.f32 %v620, 0.0
      %v935 = vmax.f32 %v625, 0.0
      %v936 = vmax.f32 %v630, 0.0
      %v937 = vmax.f32 %v635, 0.0
      %v938 = vmax.f32 %v640, 0.0
      %v939 = vmax.f32 %v645, 0.0
      %v940 = vmax.f32 %v650, 0.0
      %v941 = vmax.f32 %v655, 0.0
      %v942 = vmax.f32 %v660, 0.0
      %v943 = vmax.f32 %v665, 0.0
      %v944 = vmax.f32 %v670, 0.0
      %v945 = vmax.f32 %v675, 0.0
      %v946 = vmax.f32 %v680, 0.0
      %v947 = vmax.f32 %v685, 0.0
      %v948 = vmax.f32 %v690, 0.0
      %v949 = vmax.f32 %v695, 0.0
      %v950 = vmax.f32 %v700, 0.0
      %v951 = vmax.f32 %v705, 0.0
      %v952 = vmax.f32 %v710, 0.0
      %v953 = vmax.f32 %v715, 0.0
      %v954 = vmax.f32 %v720, 0.0
      %v955 = vmax.f32 %v725, 0.0
      %v956 = vmax.f32 %v730, 0.0
      %v957 = vmax.f32 %v735, 0.0
      %v958 = vmax.f32 %v740, 0.0
      %v959 = vmax.f32 %v745, 0.0
      %v960 = vmax.f32 %v750, 0.0
      %v961 = vmax.f32 %v755, 0.0
      %v962 = vmax.f32 %v760, 0.0
      %v963 = vmax.f32 %v765, 0.0
      %v964 = vmax.f32 %v770, 0.0
      %v965 = vmax.f32 %v775, 0.0
      %v966 = vmax.f32 %v780, 0.0
      %v967 = vmax.f32 %v785, 0.0
      %v968 = vmax.f32 %v790, 0.0
      %v969 = vmax.f32 %v795, 0.0
      %v970 = vmax.f32 %v800, 0.0
      %v971 = vmax.f32 %v805, 0.0
      %v972 = vmax.f32 %v810, 0.0
      %v973 = vmax.f32 %v815, 0.0
      %v974 = vmax.f32 %v820, 0.0
      %v975 = vmax.f32 %v825, 0.0
      %v976 = vmax.f32 %v830, 0.0
      %v977 = vmax.f32 %v835, 0.0
      %v978 = vmax.f32 %v840, 0.0
      %v979 = vmax.f32 %v845, 0.0
      %v980 = vmax.f32 %v850, 0.0
      %v981 = vmax.f32 %v855, 0.0
      %v982 = vmax.f32 %v860, 0.0
      %v983 = vmax.f32 %v865, 0.0
      %v984 = vmax.f32 %v870, 0.0
      %v985 = vmax.f32 %v875, 0.0
      %v986 = vmax.f32 %v880, 0.0
      %v987 = vmax.f32 %v885, 0.0
      %v988 = vmax.f32 %v890, 0.0
      %v989 = vmax.f32 %v895, 0.0
      %v990 = vmax.f32 %v900, 0.0
      %v991 = vmax.f32 %v905, 0.0
      %v992 = vmax.f32 %v910, 0.0
      %v993 = vmax.f32 %v915, 0.0
      %v994 = vmax.f32 %v920, 0.0
      %v995 = vmax.f32 %v925, 0.0
      %v996 = vmax.f32 %v930, 0.0
      %v997 = vpack.c.bf16 %v934, %v933
      %v998 = vpack.c.bf16 %v936, %v935
      %v999 = vpack.c.bf16 %v938, %v937
      %v1000 = vpack.c.bf16 %v940, %v939
      %v1001 = vpack.c.bf16 %v942, %v941
      %v1002 = vpack.c.bf16 %v944, %v943
      %v1003 = vpack.c.bf16 %v946, %v945
      %v1004 = vpack.c.bf16 %v948, %v947
      %v1005 = vpack.c.bf16 %v950, %v949
      %v1006 = vpack.c.bf16 %v952, %v951
      %v1007 = vpack.c.bf16 %v954, %v953
      %v1008 = vpack.c.bf16 %v956, %v955
      %v1009 = vpack.c.bf16 %v958, %v957
      %v1010 = vpack.c.bf16 %v960, %v959
      %v1011 = vpack.c.bf16 %v962, %v961
      %v1012 = vpack.c.bf16 %v964, %v963
      %v1013 = vpack.c.bf16 %v966, %v965
      %v1014 = vpack.c.bf16 %v968, %v967
      %v1015 = vpack.c.bf16 %v970, %v969
      %v1016 = vpack.c.bf16 %v972, %v971
      %v1017 = vpack.c.bf16 %v974, %v973
      %v1018 = vpack.c.bf16 %v976, %v975
      %v1019 = vpack.c.bf16 %v978, %v977
      %v1020 = vpack.c.bf16 %v980, %v979
      %v1021 = vpack.c.bf16 %v982, %v981
      %v1022 = vpack.c.bf16 %v984, %v983
      %v1023 = vpack.c.bf16 %v986, %v985
      %v1024 = vpack.c.bf16 %v988, %v987
      %v1025 = vpack.c.bf16 %v990, %v989
      %v1026 = vpack.c.bf16 %v992, %v991
      %v1027 = vpack.c.bf16 %v994, %v993
      %v1028 = vpack.c.bf16 %v996, %v995
      %v1029 = vld [vmem:[%s3] sm:$0xf]
      %v1030 = vld [vmem:[%s3 + $0x4] sm:$0xf]
      %v1031 = vld [vmem:[%s3 + $0x8] sm:$0xf]
      %v1032 = vld [vmem:[%s3 + $0xc] sm:$0xf]
      %v1033 = vld [vmem:[%s3 + $0x10] sm:$0xf]
      %v1034 = vld [vmem:[%s3 + $0x14] sm:$0xf]
      %v1035 = vld [vmem:[%s3 + $0x18] sm:$0xf]
      %v1036 = vld [vmem:[%s3 + $0x1c] sm:$0xf]
      %v1037 = vld [vmem:[%s3 + $0x20] sm:$0xf]
      %v1038 = vld [vmem:[%s3 + $0x24] sm:$0xf]
      %v1039 = vld [vmem:[%s3 + $0x28] sm:$0xf]
      %v1040 = vld [vmem:[%s3 + $0x2c] sm:$0xf]
      %v1041 = vld [vmem:[%s3 + $0x30] sm:$0xf]
      %v1042 = vld [vmem:[%s3 + $0x34] sm:$0xf]
      %v1043 = vld [vmem:[%s3 + $0x38] sm:$0xf]
      %v1044 = vld [vmem:[%s3 + $0x3c] sm:$0xf]
      %v1045 = vld [vmem:[%s4] sm:$0x1]
      %v1047 = vlaneseq
      %v1048 = vshrl.u32 %v1047, 7
      %v1049 = vsub.s32 0, %v1048
      %v1050 = vrot.slane %v1045, %v1049
      %v1068 = vunpack.c.l.b16 %v1029
      %v1069 = vunpack.c.l.b16 %v1030
      %v1070 = vunpack.c.l.b16 %v1031
      %v1071 = vunpack.c.l.b16 %v1032
      %v1072 = vunpack.c.l.b16 %v1033
      %v1073 = vunpack.c.l.b16 %v1034
      %v1074 = vunpack.c.l.b16 %v1035
      %v1075 = vunpack.c.l.b16 %v1036
      %v1076 = vunpack.c.l.b16 %v1037
      %v1077 = vunpack.c.l.b16 %v1038
      %v1078 = vunpack.c.l.b16 %v1039
      %v1079 = vunpack.c.l.b16 %v1040
      %v1080 = vunpack.c.l.b16 %v1041
      %v1081 = vunpack.c.l.b16 %v1042
      %v1082 = vunpack.c.l.b16 %v1043
      %v1083 = vunpack.c.l.b16 %v1044
      %v1084 = vpack.c.b16 %v1069, %v1068
      %v1085 = vpack.c.b16 %v1071, %v1070
      %v1086 = vpack.c.b16 %v1073, %v1072
      %v1087 = vpack.c.b16 %v1075, %v1074
      %v1088 = vpack.c.b16 %v1077, %v1076
      %v1089 = vpack.c.b16 %v1079, %v1078
      %v1090 = vpack.c.b16 %v1081, %v1080
      %v1091 = vpack.c.b16 %v1083, %v1082
      %1100 = vmatprep.subr.bf16.mxu0 0
      %1101 = vmatpush1.bf16.msra.mxu0 %v1084
      %1102 = vmatprep.subr.bf16.mxu0 0
      %1103 = vmatpush1.bf16.msra.mxu0 %v1085
      %1104 = vmatprep.subr.bf16.mxu0 0
      %1105 = vmatpush1.bf16.msra.mxu0 %v1086
      %1106 = vmatprep.subr.bf16.mxu0 0
      %1107 = vmatpush1.bf16.msra.mxu0 %v1087
      %1108 = vmatprep.subr.bf16.mxu0 0
      %1109 = vmatpush1.bf16.msra.mxu0 %v1088
      %1110 = vmatprep.subr.bf16.mxu0 0
      %1111 = vmatpush1.bf16.msra.mxu0 %v1089
      %1112 = vmatprep.subr.bf16.mxu0 0
      %1113 = vmatpush1.bf16.msra.mxu0 %v1090
      %1114 = vmatprep.subr.bf16.mxu0 0
      %1115 = vmatpush1.bf16.msra.mxu0 %v1091
      %1116 = vmatprep.subr.bf16.mxu0 0
      %1117 = vmatpush1.bf16.msra.mxu0 0
      %1118 = vmatprep.subr.bf16.mxu0 0
      %1119 = vmatpush1.bf16.msra.mxu0 0
      %1120 = vmatprep.subr.bf16.mxu0 0
      %1121 = vmatpush1.bf16.msra.mxu0 0
      %1122 = vmatprep.subr.bf16.mxu0 0
      %1123 = vmatpush1.bf16.msra.mxu0 0
      %1124 = vmatprep.subr.bf16.mxu0 0
      %1125 = vmatpush1.bf16.msra.mxu0 0
      %1126 = vmatprep.subr.bf16.mxu0 0
      %1127 = vmatpush1.bf16.msra.mxu0 0
      %1128 = vmatprep.subr.bf16.mxu0 0
      %1129 = vmatpush1.bf16.msra.mxu0 0
      %1130 = vmatprep.subr.bf16.mxu0 0
      %1131 = vmatpush1.bf16.msra.mxu0 0
      %1132 = vmatprep.mubr.bf16.mxu0 0
      %1133 = vmatmul.mubr.bf16.gmra.mrb[0].mxu0 %v997
      %v1134 = vpop.f32.mrb[0].mxu0
      %v1135 = vadd.f32 %v1050, %v1134
      %v1136 = vpop.f32.mrb[0].mxu0
      %v1137 = vpop.f32.mrb[0].mxu0
      %v1138 = vadd.f32 %v1050, %v1137
      %v1139 = vpop.f32.mrb[0].mxu0
      %1140 = vmatprep.mubr.bf16.mxu0 0
      %1141 = vmatmul.mubr.bf16.gmra.mrb[0].mxu0 %v998
      %v1142 = vpop.f32.mrb[0].mxu0
      %v1143 = vadd.f32 %v1050, %v1142
      %v1144 = vpop.f32.mrb[0].mxu0
      %v1145 = vpop.f32.mrb[0].mxu0
      %v1146 = vadd.f32 %v1050, %v1145
      %v1147 = vpop.f32.mrb[0].mxu0
      %1148 = vmatprep.mubr.bf16.mxu0 0
      %1149 = vmatmul.mubr.bf16.gmra.mrb[0].mxu0 %v999
      %v1150 = vpop.f32.mrb[0].mxu0
      %v1151 = vadd.f32 %v1050, %v1150
      %v1152 = vpop.f32.mrb[0].mxu0
      %v1153 = vpop.f32.mrb[0].mxu0
      %v1154 = vadd.f32 %v1050, %v1153
      %v1155 = vpop.f32.mrb[0].mxu0
      %1156 = vmatprep.mubr.bf16.mxu0 0
      %1157 = vmatmul.mubr.bf16.gmra.mrb[0].mxu0 %v1000
      %v1158 = vpop.f32.mrb[0].mxu0
      %v1159 = vadd.f32 %v1050, %v1158
      %v1160 = vpop.f32.mrb[0].mxu0
      %v1161 = vpop.f32.mrb[0].mxu0
      %v1162 = vadd.f32 %v1050, %v1161
      %v1163 = vpop.f32.mrb[0].mxu0
      %1164 = vmatprep.mubr.bf16.mxu0 0
      %1165 = vmatmul.mubr.bf16.gmra.mrb[0].mxu0 %v1001
      %v1166 = vpop.f32.mrb[0].mxu0
      %v1167 = vadd.f32 %v1050, %v1166
      %v1168 = vpop.f32.mrb[0].mxu0
      %v1169 = vpop.f32.mrb[0].mxu0
      %v1170 = vadd.f32 %v1050, %v1169
      %v1171 = vpop.f32.mrb[0].mxu0
      %1172 = vmatprep.mubr.bf16.mxu0 0
      %1173 = vmatmul.mubr.bf16.gmra.mrb[0].mxu0 %v1002
      %v1174 = vpop.f32.mrb[0].mxu0
      %v1175 = vadd.f32 %v1050, %v1174
      %v1176 = vpop.f32.mrb[0].mxu0
      %v1177 = vpop.f32.mrb[0].mxu0
      %v1178 = vadd.f32 %v1050, %v1177
      %v1179 = vpop.f32.mrb[0].mxu0
      %1180 = vmatprep.mubr.bf16.mxu0 0
      %1181 = vmatmul.mubr.bf16.gmra.mrb[0].mxu0 %v1003
      %v1182 = vpop.f32.mrb[0].mxu0
      %v1183 = vadd.f32 %v1050, %v1182
      %v1184 = vpop.f32.mrb[0].mxu0
      %v1185 = vpop.f32.mrb[0].mxu0
      %v1186 = vadd.f32 %v1050, %v1185
      %v1187 = vpop.f32.mrb[0].mxu0
      %1188 = vmatprep.mubr.bf16.mxu0 0
      %1189 = vmatmul.mubr.bf16.gmra.mrb[0].mxu0 %v1004
      %v1190 = vpop.f32.mrb[0].mxu0
      %v1191 = vadd.f32 %v1050, %v1190
      %v1192 = vpop.f32.mrb[0].mxu0
      %v1193 = vpop.f32.mrb[0].mxu0
      %v1194 = vadd.f32 %v1050, %v1193
      %v1195 = vpop.f32.mrb[0].mxu0
      %1196 = vmatprep.mubr.bf16.mxu0 0
      %1197 = vmatmul.mubr.bf16.gmra.mrb[0].mxu0 %v1005
      %v1198 = vpop.f32.mrb[0].mxu0
      %v1199 = vadd.f32 %v1050, %v1198
      %v1200 = vpop.f32.mrb[0].mxu0
      %v1201 = vpop.f32.mrb[0].mxu0
      %v1202 = vadd.f32 %v1050, %v1201
      %v1203 = vpop.f32.mrb[0].mxu0
      %1204 = vmatprep.mubr.bf16.mxu0 0
      %1205 = vmatmul.mubr.bf16.gmra.mrb[0].mxu0 %v1006
      %v1206 = vpop.f32.mrb[0].mxu0
      %v1207 = vadd.f32 %v1050, %v1206
      %v1208 = vpop.f32.mrb[0].mxu0
      %v1209 = vpop.f32.mrb[0].mxu0
      %v1210 = vadd.f32 %v1050, %v1209
      %v1211 = vpop.f32.mrb[0].mxu0
      %1212 = vmatprep.mubr.bf16.mxu0 0
      %1213 = vmatmul.mubr.bf16.gmra.mrb[0].mxu0 %v1007
      %v1214 = vpop.f32.mrb[0].mxu0
      %v1215 = vadd.f32 %v1050, %v1214
      %v1216 = vpop.f32.mrb[0].mxu0
      %v1217 = vpop.f32.mrb[0].mxu0
      %v1218 = vadd.f32 %v1050, %v1217
      %v1219 = vpop.f32.mrb[0].mxu0
      %1220 = vmatprep.mubr.bf16.mxu0 0
      %1221 = vmatmul.mubr.bf16.gmra.mrb[0].mxu0 %v1008
      %v1222 = vpop.f32.mrb[0].mxu0
      %v1223 = vadd.f32 %v1050, %v1222
      %v1224 = vpop.f32.mrb[0].mxu0
      %v1225 = vpop.f32.mrb[0].mxu0
      %v1226 = vadd.f32 %v1050, %v1225
      %v1227 = vpop.f32.mrb[0].mxu0
      %1228 = vmatprep.mubr.bf16.mxu0 0
      %1229 = vmatmul.mubr.bf16.gmra.mrb[0].mxu0 %v1009
      %v1230 = vpop.f32.mrb[0].mxu0
      %v1231 = vadd.f32 %v1050, %v1230
      %v1232 = vpop.f32.mrb[0].mxu0
      %v1233 = vpop.f32.mrb[0].mxu0
      %v1234 = vadd.f32 %v1050, %v1233
      %v1235 = vpop.f32.mrb[0].mxu0
      %1236 = vmatprep.mubr.bf16.mxu0 0
      %1237 = vmatmul.mubr.bf16.gmra.mrb[0].mxu0 %v1010
      %v1238 = vpop.f32.mrb[0].mxu0
      %v1239 = vadd.f32 %v1050, %v1238
      %v1240 = vpop.f32.mrb[0].mxu0
      %v1241 = vpop.f32.mrb[0].mxu0
      %v1242 = vadd.f32 %v1050, %v1241
      %v1243 = vpop.f32.mrb[0].mxu0
      %1244 = vmatprep.mubr.bf16.mxu0 0
      %1245 = vmatmul.mubr.bf16.gmra.mrb[0].mxu0 %v1011
      %v1246 = vpop.f32.mrb[0].mxu0
      %v1247 = vadd.f32 %v1050, %v1246
      %v1248 = vpop.f32.mrb[0].mxu0
      %v1249 = vpop.f32.mrb[0].mxu0
      %v1250 = vadd.f32 %v1050, %v1249
      %v1251 = vpop.f32.mrb[0].mxu0
      %1252 = vmatprep.mubr.bf16.mxu0 0
      %1253 = vmatmul.mubr.bf16.gmra.mrb[0].mxu0 %v1012
      %v1254 = vpop.f32.mrb[0].mxu0
      %v1255 = vadd.f32 %v1050, %v1254
      %v1256 = vpop.f32.mrb[0].mxu0
      %v1257 = vpop.f32.mrb[0].mxu0
      %v1258 = vadd.f32 %v1050, %v1257
      %v1259 = vpop.f32.mrb[0].mxu0
      %1260 = vmatprep.mubr.bf16.mxu0 0
      %1261 = vmatmul.mubr.bf16.gmra.mrb[0].mxu0 %v1013
      %v1262 = vpop.f32.mrb[0].mxu0
      %v1263 = vadd.f32 %v1050, %v1262
      %v1264 = vpop.f32.mrb[0].mxu0
      %v1265 = vpop.f32.mrb[0].mxu0
      %v1266 = vadd.f32 %v1050, %v1265
      %v1267 = vpop.f32.mrb[0].mxu0
      %1268 = vmatprep.mubr.bf16.mxu0 0
      %1269 = vmatmul.mubr.bf16.gmra.mrb[0].mxu0 %v1014
      %v1270 = vpop.f32.mrb[0].mxu0
      %v1271 = vadd.f32 %v1050, %v1270
      %v1272 = vpop.f32.mrb[0].mxu0
      %v1273 = vpop.f32.mrb[0].mxu0
      %v1274 = vadd.f32 %v1050, %v1273
      %v1275 = vpop.f32.mrb[0].mxu0
      %1276 = vmatprep.mubr.bf16.mxu0 0
      %1277 = vmatmul.mubr.bf16.gmra.mrb[0].mxu0 %v1015
      %v1278 = vpop.f32.mrb[0].mxu0
      %v1279 = vadd.f32 %v1050, %v1278
      %v1280 = vpop.f32.mrb[0].mxu0
      %v1281 = vpop.f32.mrb[0].mxu0
      %v1282 = vadd.f32 %v1050, %v1281
      %v1283 = vpop.f32.mrb[0].mxu0
      %1284 = vmatprep.mubr.bf16.mxu0 0
      %1285 = vmatmul.mubr.bf16.gmra.mrb[0].mxu0 %v1016
      %v1286 = vpop.f32.mrb[0].mxu0
      %v1287 = vadd.f32 %v1050, %v1286
      %v1288 = vpop.f32.mrb[0].mxu0
      %v1289 = vpop.f32.mrb[0].mxu0
      %v1290 = vadd.f32 %v1050, %v1289
      %v1291 = vpop.f32.mrb[0].mxu0
      %1292 = vmatprep.mubr.bf16.mxu0 0
      %1293 = vmatmul.mubr.bf16.gmra.mrb[0].mxu0 %v1017
      %v1294 = vpop.f32.mrb[0].mxu0
      %v1295 = vadd.f32 %v1050, %v1294
      %v1296 = vpop.f32.mrb[0].mxu0
      %v1297 = vpop.f32.mrb[0].mxu0
      %v1298 = vadd.f32 %v1050, %v1297
      %v1299 = vpop.f32.mrb[0].mxu0
      %1300 = vmatprep.mubr.bf16.mxu0 0
      %1301 = vmatmul.mubr.bf16.gmra.mrb[0].mxu0 %v1018
      %v1302 = vpop.f32.mrb[0].mxu0
      %v1303 = vadd.f32 %v1050, %v1302
      %v1304 = vpop.f32.mrb[0].mxu0
      %v1305 = vpop.f32.mrb[0].mxu0
      %v1306 = vadd.f32 %v1050, %v1305
      %v1307 = vpop.f32.mrb[0].mxu0
      %1308 = vmatprep.mubr.bf16.mxu0 0
      %1309 = vmatmul.mubr.bf16.gmra.mrb[0].mxu0 %v1019
      %v1310 = vpop.f32.mrb[0].mxu0
      %v1311 = vadd.f32 %v1050, %v1310
      %v1312 = vpop.f32.mrb[0].mxu0
      %v1313 = vpop.f32.mrb[0].mxu0
      %v1314 = vadd.f32 %v1050, %v1313
      %v1315 = vpop.f32.mrb[0].mxu0
      %1316 = vmatprep.mubr.bf16.mxu0 0
      %1317 = vmatmul.mubr.bf16.gmra.mrb[0].mxu0 %v1020
      %v1318 = vpop.f32.mrb[0].mxu0
      %v1319 = vadd.f32 %v1050, %v1318
      %v1320 = vpop.f32.mrb[0].mxu0
      %v1321 = vpop.f32.mrb[0].mxu0
      %v1322 = vadd.f32 %v1050, %v1321
      %v1323 = vpop.f32.mrb[0].mxu0
      %1324 = vmatprep.mubr.bf16.mxu0 0
      %1325 = vmatmul.mubr.bf16.gmra.mrb[0].mxu0 %v1021
      %v1326 = vpop.f32.mrb[0].mxu0
      %v1327 = vadd.f32 %v1050, %v1326
      %v1328 = vpop.f32.mrb[0].mxu0
      %v1329 = vpop.f32.mrb[0].mxu0
      %v1330 = vadd.f32 %v1050, %v1329
      %v1331 = vpop.f32.mrb[0].mxu0
      %1332 = vmatprep.mubr.bf16.mxu0 0
      %1333 = vmatmul.mubr.bf16.gmra.mrb[0].mxu0 %v1022
      %v1334 = vpop.f32.mrb[0].mxu0
      %v1335 = vadd.f32 %v1050, %v1334
      %v1336 = vpop.f32.mrb[0].mxu0
      %v1337 = vpop.f32.mrb[0].mxu0
      %v1338 = vadd.f32 %v1050, %v1337
      %v1339 = vpop.f32.mrb[0].mxu0
      %1340 = vmatprep.mubr.bf16.mxu0 0
      %1341 = vmatmul.mubr.bf16.gmra.mrb[0].mxu0 %v1023
      %v1342 = vpop.f32.mrb[0].mxu0
      %v1343 = vadd.f32 %v1050, %v1342
      %v1344 = vpop.f32.mrb[0].mxu0
      %v1345 = vpop.f32.mrb[0].mxu0
      %v1346 = vadd.f32 %v1050, %v1345
      %v1347 = vpop.f32.mrb[0].mxu0
      %1348 = vmatprep.mubr.bf16.mxu0 0
      %1349 = vmatmul.mubr.bf16.gmra.mrb[0].mxu0 %v1024
      %v1350 = vpop.f32.mrb[0].mxu0
      %v1351 = vadd.f32 %v1050, %v1350
      %v1352 = vpop.f32.mrb[0].mxu0
      %v1353 = vpop.f32.mrb[0].mxu0
      %v1354 = vadd.f32 %v1050, %v1353
      %v1355 = vpop.f32.mrb[0].mxu0
      %1356 = vmatprep.mubr.bf16.mxu0 0
      %1357 = vmatmul.mubr.bf16.gmra.mrb[0].mxu0 %v1025
      %v1358 = vpop.f32.mrb[0].mxu0
      %v1359 = vadd.f32 %v1050, %v1358
      %v1360 = vpop.f32.mrb[0].mxu0
      %v1361 = vpop.f32.mrb[0].mxu0
      %v1362 = vadd.f32 %v1050, %v1361
      %v1363 = vpop.f32.mrb[0].mxu0
      %1364 = vmatprep.mubr.bf16.mxu0 0
      %1365 = vmatmul.mubr.bf16.gmra.mrb[0].mxu0 %v1026
      %v1366 = vpop.f32.mrb[0].mxu0
      %v1367 = vadd.f32 %v1050, %v1366
      %v1368 = vpop.f32.mrb[0].mxu0
      %v1369 = vpop.f32.mrb[0].mxu0
      %v1370 = vadd.f32 %v1050, %v1369
      %v1371 = vpop.f32.mrb[0].mxu0
      %1372 = vmatprep.mubr.bf16.mxu0 0
      %1373 = vmatmul.mubr.bf16.gmra.mrb[0].mxu0 %v1027
      %v1374 = vpop.f32.mrb[0].mxu0
      %v1375 = vadd.f32 %v1050, %v1374
      %v1376 = vpop.f32.mrb[0].mxu0
      %v1377 = vpop.f32.mrb[0].mxu0
      %v1378 = vadd.f32 %v1050, %v1377
      %v1379 = vpop.f32.mrb[0].mxu0
      %1380 = vmatprep.mubr.bf16.mxu0 0
      %1381 = vmatmul.mubr.bf16.gmra.mrb[0].mxu0 %v1028
      %v1382 = vpop.f32.mrb[0].mxu0
      %v1383 = vadd.f32 %v1050, %v1382
      %v1384 = vpop.f32.mrb[0].mxu0
      %v1385 = vpop.f32.mrb[0].mxu0
      %v1386 = vadd.f32 %v1050, %v1385
      %v1387 = vpop.f32.mrb[0].mxu0
      %1388 = vdwg.mxu0
      %v1389 = vmax.f32 %v1135, 0.0
      %v1390 = vmax.f32 %v1138, 0.0
      %v1391 = vmax.f32 %v1143, 0.0
      %v1392 = vmax.f32 %v1146, 0.0
      %v1393 = vmax.f32 %v1151, 0.0
      %v1394 = vmax.f32 %v1154, 0.0
      %v1395 = vmax.f32 %v1159, 0.0
      %v1396 = vmax.f32 %v1162, 0.0
      %v1397 = vmax.f32 %v1167, 0.0
      %v1398 = vmax.f32 %v1170, 0.0
      %v1399 = vmax.f32 %v1175, 0.0
      %v1400 = vmax.f32 %v1178, 0.0
      %v1401 = vmax.f32 %v1183, 0.0
      %v1402 = vmax.f32 %v1186, 0.0
      %v1403 = vmax.f32 %v1191, 0.0
      %v1404 = vmax.f32 %v1194, 0.0
      %v1405 = vmax.f32 %v1199, 0.0
      %v1406 = vmax.f32 %v1202, 0.0
      %v1407 = vmax.f32 %v1207, 0.0
      %v1408 = vmax.f32 %v1210, 0.0
      %v1409 = vmax.f32 %v1215, 0.0
      %v1410 = vmax.f32 %v1218, 0.0
      %v1411 = vmax.f32 %v1223, 0.0
      %v1412 = vmax.f32 %v1226, 0.0
      %v1413 = vmax.f32 %v1231, 0.0
      %v1414 = vmax.f32 %v1234, 0.0
      %v1415 = vmax.f32 %v1239, 0.0
      %v1416 = vmax.f32 %v1242, 0.0
      %v1417 = vmax.f32 %v1247, 0.0
      %v1418 = vmax.f32 %v1250, 0.0
      %v1419 = vmax.f32 %v1255, 0.0
      %v1420 = vmax.f32 %v1258, 0.0
      %v1421 = vmax.f32 %v1263, 0.0
      %v1422 = vmax.f32 %v1266, 0.0
      %v1423 = vmax.f32 %v1271, 0.0
      %v1424 = vmax.f32 %v1274, 0.0
      %v1425 = vmax.f32 %v1279, 0.0
      %v1426 = vmax.f32 %v1282, 0.0
      %v1427 = vmax.f32 %v1287, 0.0
      %v1428 = vmax.f32 %v1290, 0.0
      %v1429 = vmax.f32 %v1295, 0.0
      %v1430 = vmax.f32 %v1298, 0.0
      %v1431 = vmax.f32 %v1303, 0.0
      %v1432 = vmax.f32 %v1306, 0.0
      %v1433 = vmax.f32 %v1311, 0.0
      %v1434 = vmax.f32 %v1314, 0.0
      %v1435 = vmax.f32 %v1319, 0.0
      %v1436 = vmax.f32 %v1322, 0.0
      %v1437 = vmax.f32 %v1327, 0.0
      %v1438 = vmax.f32 %v1330, 0.0
      %v1439 = vmax.f32 %v1335, 0.0
      %v1440 = vmax.f32 %v1338, 0.0
      %v1441 = vmax.f32 %v1343, 0.0
      %v1442 = vmax.f32 %v1346, 0.0
      %v1443 = vmax.f32 %v1351, 0.0
      %v1444 = vmax.f32 %v1354, 0.0
      %v1445 = vmax.f32 %v1359, 0.0
      %v1446 = vmax.f32 %v1362, 0.0
      %v1447 = vmax.f32 %v1367, 0.0
      %v1448 = vmax.f32 %v1370, 0.0
      %v1449 = vmax.f32 %v1375, 0.0
      %v1450 = vmax.f32 %v1378, 0.0
      %v1451 = vmax.f32 %v1383, 0.0
      %v1452 = vmax.f32 %v1386, 0.0
      %v1453 = vpack.c.bf16 %v1390, %v1389
      %v1454 = vpack.c.bf16 %v1392, %v1391
      %v1455 = vpack.c.bf16 %v1394, %v1393
      %v1456 = vpack.c.bf16 %v1396, %v1395
      %v1457 = vpack.c.bf16 %v1398, %v1397
      %v1458 = vpack.c.bf16 %v1400, %v1399
      %v1459 = vpack.c.bf16 %v1402, %v1401
      %v1460 = vpack.c.bf16 %v1404, %v1403
      %v1461 = vpack.c.bf16 %v1406, %v1405
      %v1462 = vpack.c.bf16 %v1408, %v1407
      %v1463 = vpack.c.bf16 %v1410, %v1409
      %v1464 = vpack.c.bf16 %v1412, %v1411
      %v1465 = vpack.c.bf16 %v1414, %v1413
      %v1466 = vpack.c.bf16 %v1416, %v1415
      %v1467 = vpack.c.bf16 %v1418, %v1417
      %v1468 = vpack.c.bf16 %v1420, %v1419
      %v1469 = vpack.c.bf16 %v1422, %v1421
      %v1470 = vpack.c.bf16 %v1424, %v1423
      %v1471 = vpack.c.bf16 %v1426, %v1425
      %v1472 = vpack.c.bf16 %v1428, %v1427
      %v1473 = vpack.c.bf16 %v1430, %v1429
      %v1474 = vpack.c.bf16 %v1432, %v1431
      %v1475 = vpack.c.bf16 %v1434, %v1433
      %v1476 = vpack.c.bf16 %v1436, %v1435
      %v1477 = vpack.c.bf16 %v1438, %v1437
      %v1478 = vpack.c.bf16 %v1440, %v1439
      %v1479 = vpack.c.bf16 %v1442, %v1441
      %v1480 = vpack.c.bf16 %v1444, %v1443
      %v1481 = vpack.c.bf16 %v1446, %v1445
      %v1482 = vpack.c.bf16 %v1448, %v1447
      %v1483 = vpack.c.bf16 %v1450, %v1449
      %v1484 = vpack.c.bf16 %v1452, %v1451
      %v1485 = vld [vmem:[%s5] sm:$0xf]
      %v1486 = vld [vmem:[%s5 + $0x4] sm:$0xf]
      %v1487 = vld [vmem:[%s5 + $0x8] sm:$0xf]
      %v1488 = vld [vmem:[%s5 + $0xc] sm:$0xf]
      %v1489 = vld [vmem:[%s5 + $0x10] sm:$0xf]
      %v1490 = vld [vmem:[%s5 + $0x14] sm:$0xf]
      %v1491 = vld [vmem:[%s5 + $0x18] sm:$0xf]
      %v1492 = vld [vmem:[%s5 + $0x1c] sm:$0xf]
      %v1493 = vld [vmem:[%s5 + $0x20] sm:$0xf]
      %v1494 = vld [vmem:[%s5 + $0x24] sm:$0xf]
      %v1495 = vld [vmem:[%s5 + $0x28] sm:$0xf]
      %v1496 = vld [vmem:[%s5 + $0x2c] sm:$0xf]
      %v1497 = vld [vmem:[%s5 + $0x30] sm:$0xf]
      %v1498 = vld [vmem:[%s5 + $0x34] sm:$0xf]
      %v1499 = vld [vmem:[%s5 + $0x38] sm:$0xf]
      %v1500 = vld [vmem:[%s5 + $0x3c] sm:$0xf]
      %v1501 = vld [vmem:[%s6] sm:$0x1]
      %v1503 = vlaneseq
      %v1504 = vshrl.u32 %v1503, 7
      %v1505 = vsub.s32 0, %v1504
      %v1506 = vrot.slane %v1501, %v1505
      %v1524 = vunpack.c.l.b16 %v1485
      %v1525 = vunpack.c.l.b16 %v1486
      %v1526 = vunpack.c.l.b16 %v1487
      %v1527 = vunpack.c.l.b16 %v1488
      %v1528 = vunpack.c.l.b16 %v1489
      %v1529 = vunpack.c.l.b16 %v1490
      %v1530 = vunpack.c.l.b16 %v1491
      %v1531 = vunpack.c.l.b16 %v1492
      %v1532 = vunpack.c.l.b16 %v1493
      %v1533 = vunpack.c.l.b16 %v1494
      %v1534 = vunpack.c.l.b16 %v1495
      %v1535 = vunpack.c.l.b16 %v1496
      %v1536 = vunpack.c.l.b16 %v1497
      %v1537 = vunpack.c.l.b16 %v1498
      %v1538 = vunpack.c.l.b16 %v1499
      %v1539 = vunpack.c.l.b16 %v1500
      %v1540 = vpack.c.b16 %v1525, %v1524
      %v1541 = vpack.c.b16 %v1527, %v1526
      %v1542 = vpack.c.b16 %v1529, %v1528
      %v1543 = vpack.c.b16 %v1531, %v1530
      %v1544 = vpack.c.b16 %v1533, %v1532
      %v1545 = vpack.c.b16 %v1535, %v1534
      %v1546 = vpack.c.b16 %v1537, %v1536
      %v1547 = vpack.c.b16 %v1539, %v1538
      %1556 = vmatprep.subr.bf16.mxu0 0
      %1557 = vmatpush1.bf16.msra.mxu0 %v1540
      %1558 = vmatprep.subr.bf16.mxu0 0
      %1559 = vmatpush1.bf16.msra.mxu0 %v1541
      %1560 = vmatprep.subr.bf16.mxu0 0
      %1561 = vmatpush1.bf16.msra.mxu0 %v1542
      %1562 = vmatprep.subr.bf16.mxu0 0
      %1563 = vmatpush1.bf16.msra.mxu0 %v1543
      %1564 = vmatprep.subr.bf16.mxu0 0
      %1565 = vmatpush1.bf16.msra.mxu0 %v1544
      %1566 = vmatprep.subr.bf16.mxu0 0
      %1567 = vmatpush1.bf16.msra.mxu0 %v1545
      %1568 = vmatprep.subr.bf16.mxu0 0
      %1569 = vmatpush1.bf16.msra.mxu0 %v1546
      %1570 = vmatprep.subr.bf16.mxu0 0
      %1571 = vmatpush1.bf16.msra.mxu0 %v1547
      %1572 = vmatprep.subr.bf16.mxu0 0
      %1573 = vmatpush1.bf16.msra.mxu0 0
      %1574 = vmatprep.subr.bf16.mxu0 0
      %1575 = vmatpush1.bf16.msra.mxu0 0
      %1576 = vmatprep.subr.bf16.mxu0 0
      %1577 = vmatpush1.bf16.msra.mxu0 0
      %1578 = vmatprep.subr.bf16.mxu0 0
      %1579 = vmatpush1.bf16.msra.mxu0 0
      %1580 = vmatprep.subr.bf16.mxu0 0
      %1581 = vmatpush1.bf16.msra.mxu0 0
      %1582 = vmatprep.subr.bf16.mxu0 0
      %1583 = vmatpush1.bf16.msra.mxu0 0
      %1584 = vmatprep.subr.bf16.mxu0 0
      %1585 = vmatpush1.bf16.msra.mxu0 0
      %1586 = vmatprep.subr.bf16.mxu0 0
      %1587 = vmatpush1.bf16.msra.mxu0 0
      %1588 = vmatprep.mubr.bf16.mxu0 0
      %1589 = vmatmul.mubr.bf16.gmra.mrb[0].mxu0 %v1453
      %v1590 = vpop.f32.mrb[0].mxu0
      %v1591 = vadd.f32 %v1506, %v1590
      %v1592 = vpop.f32.mrb[0].mxu0
      %v1593 = vpop.f32.mrb[0].mxu0
      %v1594 = vadd.f32 %v1506, %v1593
      %v1595 = vpop.f32.mrb[0].mxu0
      %1596 = vmatprep.mubr.bf16.mxu0 0
      %1597 = vmatmul.mubr.bf16.gmra.mrb[0].mxu0 %v1454
      %v1598 = vpop.f32.mrb[0].mxu0
      %v1599 = vadd.f32 %v1506, %v1598
      %v1600 = vpop.f32.mrb[0].mxu0
      %v1601 = vpop.f32.mrb[0].mxu0
      %v1602 = vadd.f32 %v1506, %v1601
      %v1603 = vpop.f32.mrb[0].mxu0
      %1604 = vmatprep.mubr.bf16.mxu0 0
      %1605 = vmatmul.mubr.bf16.gmra.mrb[0].mxu0 %v1455
      %v1606 = vpop.f32.mrb[0].mxu0
      %v1607 = vadd.f32 %v1506, %v1606
      %v1608 = vpop.f32.mrb[0].mxu0
      %v1609 = vpop.f32.mrb[0].mxu0
      %v1610 = vadd.f32 %v1506, %v1609
      %v1611 = vpop.f32.mrb[0].mxu0
      %1612 = vmatprep.mubr.bf16.mxu0 0
      %1613 = vmatmul.mubr.bf16.gmra.mrb[0].mxu0 %v1456
      %v1614 = vpop.f32.mrb[0].mxu0
      %v1615 = vadd.f32 %v1506, %v1614
      %v1616 = vpop.f32.mrb[0].mxu0
      %v1617 = vpop.f32.mrb[0].mxu0
      %v1618 = vadd.f32 %v1506, %v1617
      %v1619 = vpop.f32.mrb[0].mxu0
      %1620 = vmatprep.mubr.bf16.mxu0 0
      %1621 = vmatmul.mubr.bf16.gmra.mrb[0].mxu0 %v1457
      %v1622 = vpop.f32.mrb[0].mxu0
      %v1623 = vadd.f32 %v1506, %v1622
      %v1624 = vpop.f32.mrb[0].mxu0
      %v1625 = vpop.f32.mrb[0].mxu0
      %v1626 = vadd.f32 %v1506, %v1625
      %v1627 = vpop.f32.mrb[0].mxu0
      %1628 = vmatprep.mubr.bf16.mxu0 0
      %1629 = vmatmul.mubr.bf16.gmra.mrb[0].mxu0 %v1458
      %v1630 = vpop.f32.mrb[0].mxu0
      %v1631 = vadd.f32 %v1506, %v1630
      %v1632 = vpop.f32.mrb[0].mxu0
      %v1633 = vpop.f32.mrb[0].mxu0
      %v1634 = vadd.f32 %v1506, %v1633
      %v1635 = vpop.f32.mrb[0].mxu0
      %1636 = vmatprep.mubr.bf16.mxu0 0
      %1637 = vmatmul.mubr.bf16.gmra.mrb[0].mxu0 %v1459
      %v1638 = vpop.f32.mrb[0].mxu0
      %v1639 = vadd.f32 %v1506, %v1638
      %v1640 = vpop.f32.mrb[0].mxu0
      %v1641 = vpop.f32.mrb[0].mxu0
      %v1642 = vadd.f32 %v1506, %v1641
      %v1643 = vpop.f32.mrb[0].mxu0
      %1644 = vmatprep.mubr.bf16.mxu0 0
      %1645 = vmatmul.mubr.bf16.gmra.mrb[0].mxu0 %v1460
      %v1646 = vpop.f32.mrb[0].mxu0
      %v1647 = vadd.f32 %v1506, %v1646
      %v1648 = vpop.f32.mrb[0].mxu0
      %v1649 = vpop.f32.mrb[0].mxu0
      %v1650 = vadd.f32 %v1506, %v1649
      %v1651 = vpop.f32.mrb[0].mxu0
      %1652 = vmatprep.mubr.bf16.mxu0 0
      %1653 = vmatmul.mubr.bf16.gmra.mrb[0].mxu0 %v1461
      %v1654 = vpop.f32.mrb[0].mxu0
      %v1655 = vadd.f32 %v1506, %v1654
      %v1656 = vpop.f32.mrb[0].mxu0
      %v1657 = vpop.f32.mrb[0].mxu0
      %v1658 = vadd.f32 %v1506, %v1657
      %v1659 = vpop.f32.mrb[0].mxu0
      %1660 = vmatprep.mubr.bf16.mxu0 0
      %1661 = vmatmul.mubr.bf16.gmra.mrb[0].mxu0 %v1462
      %v1662 = vpop.f32.mrb[0].mxu0
      %v1663 = vadd.f32 %v1506, %v1662
      %v1664 = vpop.f32.mrb[0].mxu0
      %v1665 = vpop.f32.mrb[0].mxu0
      %v1666 = vadd.f32 %v1506, %v1665
      %v1667 = vpop.f32.mrb[0].mxu0
      %1668 = vmatprep.mubr.bf16.mxu0 0
      %1669 = vmatmul.mubr.bf16.gmra.mrb[0].mxu0 %v1463
      %v1670 = vpop.f32.mrb[0].mxu0
      %v1671 = vadd.f32 %v1506, %v1670
      %v1672 = vpop.f32.mrb[0].mxu0
      %v1673 = vpop.f32.mrb[0].mxu0
      %v1674 = vadd.f32 %v1506, %v1673
      %v1675 = vpop.f32.mrb[0].mxu0
      %1676 = vmatprep.mubr.bf16.mxu0 0
      %1677 = vmatmul.mubr.bf16.gmra.mrb[0].mxu0 %v1464
      %v1678 = vpop.f32.mrb[0].mxu0
      %v1679 = vadd.f32 %v1506, %v1678
      %v1680 = vpop.f32.mrb[0].mxu0
      %v1681 = vpop.f32.mrb[0].mxu0
      %v1682 = vadd.f32 %v1506, %v1681
      %v1683 = vpop.f32.mrb[0].mxu0
      %1684 = vmatprep.mubr.bf16.mxu0 0
      %1685 = vmatmul.mubr.bf16.gmra.mrb[0].mxu0 %v1465
      %v1686 = vpop.f32.mrb[0].mxu0
      %v1687 = vadd.f32 %v1506, %v1686
      %v1688 = vpop.f32.mrb[0].mxu0
      %v1689 = vpop.f32.mrb[0].mxu0
      %v1690 = vadd.f32 %v1506, %v1689
      %v1691 = vpop.f32.mrb[0].mxu0
      %1692 = vmatprep.mubr.bf16.mxu0 0
      %1693 = vmatmul.mubr.bf16.gmra.mrb[0].mxu0 %v1466
      %v1694 = vpop.f32.mrb[0].mxu0
      %v1695 = vadd.f32 %v1506, %v1694
      %v1696 = vpop.f32.mrb[0].mxu0
      %v1697 = vpop.f32.mrb[0].mxu0
      %v1698 = vadd.f32 %v1506, %v1697
      %v1699 = vpop.f32.mrb[0].mxu0
      %1700 = vmatprep.mubr.bf16.mxu0 0
      %1701 = vmatmul.mubr.bf16.gmra.mrb[0].mxu0 %v1467
      %v1702 = vpop.f32.mrb[0].mxu0
      %v1703 = vadd.f32 %v1506, %v1702
      %v1704 = vpop.f32.mrb[0].mxu0
      %v1705 = vpop.f32.mrb[0].mxu0
      %v1706 = vadd.f32 %v1506, %v1705
      %v1707 = vpop.f32.mrb[0].mxu0
      %1708 = vmatprep.mubr.bf16.mxu0 0
      %1709 = vmatmul.mubr.bf16.gmra.mrb[0].mxu0 %v1468
      %v1710 = vpop.f32.mrb[0].mxu0
      %v1711 = vadd.f32 %v1506, %v1710
      %v1712 = vpop.f32.mrb[0].mxu0
      %v1713 = vpop.f32.mrb[0].mxu0
      %v1714 = vadd.f32 %v1506, %v1713
      %v1715 = vpop.f32.mrb[0].mxu0
      %1716 = vmatprep.mubr.bf16.mxu0 0
      %1717 = vmatmul.mubr.bf16.gmra.mrb[0].mxu0 %v1469
      %v1718 = vpop.f32.mrb[0].mxu0
      %v1719 = vadd.f32 %v1506, %v1718
      %v1720 = vpop.f32.mrb[0].mxu0
      %v1721 = vpop.f32.mrb[0].mxu0
      %v1722 = vadd.f32 %v1506, %v1721
      %v1723 = vpop.f32.mrb[0].mxu0
      %1724 = vmatprep.mubr.bf16.mxu0 0
      %1725 = vmatmul.mubr.bf16.gmra.mrb[0].mxu0 %v1470
      %v1726 = vpop.f32.mrb[0].mxu0
      %v1727 = vadd.f32 %v1506, %v1726
      %v1728 = vpop.f32.mrb[0].mxu0
      %v1729 = vpop.f32.mrb[0].mxu0
      %v1730 = vadd.f32 %v1506, %v1729
      %v1731 = vpop.f32.mrb[0].mxu0
      %1732 = vmatprep.mubr.bf16.mxu0 0
      %1733 = vmatmul.mubr.bf16.gmra.mrb[0].mxu0 %v1471
      %v1734 = vpop.f32.mrb[0].mxu0
      %v1735 = vadd.f32 %v1506, %v1734
      %v1736 = vpop.f32.mrb[0].mxu0
      %v1737 = vpop.f32.mrb[0].mxu0
      %v1738 = vadd.f32 %v1506, %v1737
      %v1739 = vpop.f32.mrb[0].mxu0
      %1740 = vmatprep.mubr.bf16.mxu0 0
      %1741 = vmatmul.mubr.bf16.gmra.mrb[0].mxu0 %v1472
      %v1742 = vpop.f32.mrb[0].mxu0
      %v1743 = vadd.f32 %v1506, %v1742
      %v1744 = vpop.f32.mrb[0].mxu0
      %v1745 = vpop.f32.mrb[0].mxu0
      %v1746 = vadd.f32 %v1506, %v1745
      %v1747 = vpop.f32.mrb[0].mxu0
      %1748 = vmatprep.mubr.bf16.mxu0 0
      %1749 = vmatmul.mubr.bf16.gmra.mrb[0].mxu0 %v1473
      %v1750 = vpop.f32.mrb[0].mxu0
      %v1751 = vadd.f32 %v1506, %v1750
      %v1752 = vpop.f32.mrb[0].mxu0
      %v1753 = vpop.f32.mrb[0].mxu0
      %v1754 = vadd.f32 %v1506, %v1753
      %v1755 = vpop.f32.mrb[0].mxu0
      %1756 = vmatprep.mubr.bf16.mxu0 0
      %1757 = vmatmul.mubr.bf16.gmra.mrb[0].mxu0 %v1474
      %v1758 = vpop.f32.mrb[0].mxu0
      %v1759 = vadd.f32 %v1506, %v1758
      %v1760 = vpop.f32.mrb[0].mxu0
      %v1761 = vpop.f32.mrb[0].mxu0
      %v1762 = vadd.f32 %v1506, %v1761
      %v1763 = vpop.f32.mrb[0].mxu0
      %1764 = vmatprep.mubr.bf16.mxu0 0
      %1765 = vmatmul.mubr.bf16.gmra.mrb[0].mxu0 %v1475
      %v1766 = vpop.f32.mrb[0].mxu0
      %v1767 = vadd.f32 %v1506, %v1766
      %v1768 = vpop.f32.mrb[0].mxu0
      %v1769 = vpop.f32.mrb[0].mxu0
      %v1770 = vadd.f32 %v1506, %v1769
      %v1771 = vpop.f32.mrb[0].mxu0
      %1772 = vmatprep.mubr.bf16.mxu0 0
      %1773 = vmatmul.mubr.bf16.gmra.mrb[0].mxu0 %v1476
      %v1774 = vpop.f32.mrb[0].mxu0
      %v1775 = vadd.f32 %v1506, %v1774
      %v1776 = vpop.f32.mrb[0].mxu0
      %v1777 = vpop.f32.mrb[0].mxu0
      %v1778 = vadd.f32 %v1506, %v1777
      %v1779 = vpop.f32.mrb[0].mxu0
      %1780 = vmatprep.mubr.bf16.mxu0 0
      %1781 = vmatmul.mubr.bf16.gmra.mrb[0].mxu0 %v1477
      %v1782 = vpop.f32.mrb[0].mxu0
      %v1783 = vadd.f32 %v1506, %v1782
      %v1784 = vpop.f32.mrb[0].mxu0
      %v1785 = vpop.f32.mrb[0].mxu0
      %v1786 = vadd.f32 %v1506, %v1785
      %v1787 = vpop.f32.mrb[0].mxu0
      %1788 = vmatprep.mubr.bf16.mxu0 0
      %1789 = vmatmul.mubr.bf16.gmra.mrb[0].mxu0 %v1478
      %v1790 = vpop.f32.mrb[0].mxu0
      %v1791 = vadd.f32 %v1506, %v1790
      %v1792 = vpop.f32.mrb[0].mxu0
      %v1793 = vpop.f32.mrb[0].mxu0
      %v1794 = vadd.f32 %v1506, %v1793
      %v1795 = vpop.f32.mrb[0].mxu0
      %1796 = vmatprep.mubr.bf16.mxu0 0
      %1797 = vmatmul.mubr.bf16.gmra.mrb[0].mxu0 %v1479
      %v1798 = vpop.f32.mrb[0].mxu0
      %v1799 = vadd.f32 %v1506, %v1798
      %v1800 = vpop.f32.mrb[0].mxu0
      %v1801 = vpop.f32.mrb[0].mxu0
      %v1802 = vadd.f32 %v1506, %v1801
      %v1803 = vpop.f32.mrb[0].mxu0
      %1804 = vmatprep.mubr.bf16.mxu0 0
      %1805 = vmatmul.mubr.bf16.gmra.mrb[0].mxu0 %v1480
      %v1806 = vpop.f32.mrb[0].mxu0
      %v1807 = vadd.f32 %v1506, %v1806
      %v1808 = vpop.f32.mrb[0].mxu0
      %v1809 = vpop.f32.mrb[0].mxu0
      %v1810 = vadd.f32 %v1506, %v1809
      %v1811 = vpop.f32.mrb[0].mxu0
      %1812 = vmatprep.mubr.bf16.mxu0 0
      %1813 = vmatmul.mubr.bf16.gmra.mrb[0].mxu0 %v1481
      %v1814 = vpop.f32.mrb[0].mxu0
      %v1815 = vadd.f32 %v1506, %v1814
      %v1816 = vpop.f32.mrb[0].mxu0
      %v1817 = vpop.f32.mrb[0].mxu0
      %v1818 = vadd.f32 %v1506, %v1817
      %v1819 = vpop.f32.mrb[0].mxu0
      %1820 = vmatprep.mubr.bf16.mxu0 0
      %1821 = vmatmul.mubr.bf16.gmra.mrb[0].mxu0 %v1482
      %v1822 = vpop.f32.mrb[0].mxu0
      %v1823 = vadd.f32 %v1506, %v1822
      %v1824 = vpop.f32.mrb[0].mxu0
      %v1825 = vpop.f32.mrb[0].mxu0
      %v1826 = vadd.f32 %v1506, %v1825
      %v1827 = vpop.f32.mrb[0].mxu0
      %1828 = vmatprep.mubr.bf16.mxu0 0
      %1829 = vmatmul.mubr.bf16.gmra.mrb[0].mxu0 %v1483
      %v1830 = vpop.f32.mrb[0].mxu0
      %v1831 = vadd.f32 %v1506, %v1830
      %v1832 = vpop.f32.mrb[0].mxu0
      %v1833 = vpop.f32.mrb[0].mxu0
      %v1834 = vadd.f32 %v1506, %v1833
      %v1835 = vpop.f32.mrb[0].mxu0
      %1836 = vmatprep.mubr.bf16.mxu0 0
      %1837 = vmatmul.mubr.bf16.gmra.mrb[0].mxu0 %v1484
      %v1838 = vpop.f32.mrb[0].mxu0
      %v1839 = vadd.f32 %v1506, %v1838
      %v1840 = vpop.f32.mrb[0].mxu0
      %v1841 = vpop.f32.mrb[0].mxu0
      %v1842 = vadd.f32 %v1506, %v1841
      %v1843 = vpop.f32.mrb[0].mxu0
      %1844 = vdwg.mxu0
      %vm1845 = vcmask 31744
      %1846 = vst.msk [vmem:[%s280] sm:$0xff] %vm1845, %v1591
      %1847 = vst.msk [vmem:[%s280 + $0x8] sm:$0xff] %vm1845, %v1594
      %1848 = vst.msk [vmem:[%s280 + $0x10] sm:$0xff] %vm1845, %v1599
      %1849 = vst.msk [vmem:[%s280 + $0x18] sm:$0xff] %vm1845, %v1602
      %1850 = vst.msk [vmem:[%s280 + $0x20] sm:$0xff] %vm1845, %v1607
      %1851 = vst.msk [vmem:[%s280 + $0x28] sm:$0xff] %vm1845, %v1610
      %1852 = vst.msk [vmem:[%s280 + $0x30] sm:$0xff] %vm1845, %v1615
      %1853 = vst.msk [vmem:[%s280 + $0x38] sm:$0xff] %vm1845, %v1618
      %1854 = vst.msk [vmem:[%s280 + $0x40] sm:$0xff] %vm1845, %v1623
      %1855 = vst.msk [vmem:[%s280 + $0x48] sm:$0xff] %vm1845, %v1626
      %1856 = vst.msk [vmem:[%s280 + $0x50] sm:$0xff] %vm1845, %v1631
      %1857 = vst.msk [vmem:[%s280 + $0x58] sm:$0xff] %vm1845, %v1634
      %1858 = vst.msk [vmem:[%s280 + $0x60] sm:$0xff] %vm1845, %v1639
      %1859 = vst.msk [vmem:[%s280 + $0x68] sm:$0xff] %vm1845, %v1642
      %1860 = vst.msk [vmem:[%s280 + $0x70] sm:$0xff] %vm1845, %v1647
      %1861 = vst.msk [vmem:[%s280 + $0x78] sm:$0xff] %vm1845, %v1650
      %1862 = vst.msk [vmem:[%s280 + $0x80] sm:$0xff] %vm1845, %v1655
      %1863 = vst.msk [vmem:[%s280 + $0x88] sm:$0xff] %vm1845, %v1658
      %1864 = vst.msk [vmem:[%s280 + $0x90] sm:$0xff] %vm1845, %v1663
      %1865 = vst.msk [vmem:[%s280 + $0x98] sm:$0xff] %vm1845, %v1666
      %1866 = vst.msk [vmem:[%s280 + $0xa0] sm:$0xff] %vm1845, %v1671
      %1867 = vst.msk [vmem:[%s280 + $0xa8] sm:$0xff] %vm1845, %v1674
      %1868 = vst.msk [vmem:[%s280 + $0xb0] sm:$0xff] %vm1845, %v1679
      %1869 = vst.msk [vmem:[%s280 + $0xb8] sm:$0xff] %vm1845, %v1682
      %1870 = vst.msk [vmem:[%s280 + $0xc0] sm:$0xff] %vm1845, %v1687
      %1871 = vst.msk [vmem:[%s280 + $0xc8] sm:$0xff] %vm1845, %v1690
      %1872 = vst.msk [vmem:[%s280 + $0xd0] sm:$0xff] %vm1845, %v1695
      %1873 = vst.msk [vmem:[%s280 + $0xd8] sm:$0xff] %vm1845, %v1698
      %1874 = vst.msk [vmem:[%s280 + $0xe0] sm:$0xff] %vm1845, %v1703
      %1875 = vst.msk [vmem:[%s280 + $0xe8] sm:$0xff] %vm1845, %v1706
      %1876 = vst.msk [vmem:[%s280 + $0xf0] sm:$0xff] %vm1845, %v1711
      %1877 = vst.msk [vmem:[%s280 + $0xf8] sm:$0xff] %vm1845, %v1714
      %1878 = vst.msk [vmem:[%s280 + $0x100] sm:$0xff] %vm1845, %v1719
      %1879 = vst.msk [vmem:[%s280 + $0x108] sm:$0xff] %vm1845, %v1722
      %1880 = vst.msk [vmem:[%s280 + $0x110] sm:$0xff] %vm1845, %v1727
      %1881 = vst.msk [vmem:[%s280 + $0x118] sm:$0xff] %vm1845, %v1730
      %1882 = vst.msk [vmem:[%s280 + $0x120] sm:$0xff] %vm1845, %v1735
      %1883 = vst.msk [vmem:[%s280 + $0x128] sm:$0xff] %vm1845, %v1738
      %1884 = vst.msk [vmem:[%s280 + $0x130] sm:$0xff] %vm1845, %v1743
      %1885 = vst.msk [vmem:[%s280 + $0x138] sm:$0xff] %vm1845, %v1746
      %1886 = vst.msk [vmem:[%s280 + $0x140] sm:$0xff] %vm1845, %v1751
      %1887 = vst.msk [vmem:[%s280 + $0x148] sm:$0xff] %vm1845, %v1754
      %1888 = vst.msk [vmem:[%s280 + $0x150] sm:$0xff] %vm1845, %v1759
      %1889 = vst.msk [vmem:[%s280 + $0x158] sm:$0xff] %vm1845, %v1762
      %1890 = vst.msk [vmem:[%s280 + $0x160] sm:$0xff] %vm1845, %v1767
      %1891 = vst.msk [vmem:[%s280 + $0x168] sm:$0xff] %vm1845, %v1770
      %1892 = vst.msk [vmem:[%s280 + $0x170] sm:$0xff] %vm1845, %v1775
      %1893 = vst.msk [vmem:[%s280 + $0x178] sm:$0xff] %vm1845, %v1778
      %1894 = vst.msk [vmem:[%s280 + $0x180] sm:$0xff] %vm1845, %v1783
      %1895 = vst.msk [vmem:[%s280 + $0x188] sm:$0xff] %vm1845, %v1786
      %1896 = vst.msk [vmem:[%s280 + $0x190] sm:$0xff] %vm1845, %v1791
      %1897 = vst.msk [vmem:[%s280 + $0x198] sm:$0xff] %vm1845, %v1794
      %1898 = vst.msk [vmem:[%s280 + $0x1a0] sm:$0xff] %vm1845, %v1799
      %1899 = vst.msk [vmem:[%s280 + $0x1a8] sm:$0xff] %vm1845, %v1802
      %1900 = vst.msk [vmem:[%s280 + $0x1b0] sm:$0xff] %vm1845, %v1807
      %1901 = vst.msk [vmem:[%s280 + $0x1b8] sm:$0xff] %vm1845, %v1810
      %1902 = vst.msk [vmem:[%s280 + $0x1c0] sm:$0xff] %vm1845, %v1815
      %1903 = vst.msk [vmem:[%s280 + $0x1c8] sm:$0xff] %vm1845, %v1818
      %1904 = vst.msk [vmem:[%s280 + $0x1d0] sm:$0xff] %vm1845, %v1823
      %1905 = vst.msk [vmem:[%s280 + $0x1d8] sm:$0xff] %vm1845, %v1826
      %1906 = vst.msk [vmem:[%s280 + $0x1e0] sm:$0xff] %vm1845, %v1831
      %1907 = vst.msk [vmem:[%s280 + $0x1e8] sm:$0xff] %vm1845, %v1834
      %1908 = vst.msk [vmem:[%s280 + $0x1f0] sm:$0xff] %vm1845, %v1839
      %1909 = vst.msk [vmem:[%s280 + $0x1f8] sm:$0xff] %vm1845, %v1842
      %s1910 = smul.u32 64, %s18
      %p1911 = scmp.lt.s32.totalorder %s1910, 127
      %s1912 = scalar_select %p1911, %s1910, 127
      %s1913 = smul.addr %s1912, 8
      %s1914 = scalar_lea.vmem %s7, %s1913
      // Predicated region
      $region49: #{tpu_custom_call.1} parent=47 // pred_check
        %p1915 = pneg %p188
      $region50: #{tpu_custom_call.1} parent=47 // pred_check_branch
        %1917 = sbr.rel (%p1915) target = $region52
      $region51: #{tpu_custom_call.1} parent=47 // pred_region
        %s1918 = smul.u32 64, %s18
      $region52: #{tpu_custom_call.1} parent=47 // pred_fallthru
        _
    $region48: #{tpu_custom_call.1} parent=5 // pred_fallthru
      _
    %p1919 = scmp.le.s32.totalorder 2, %s13
    // Predicated region
    $region53: #{tpu_custom_call.1} parent=5 // pred_check
      %p1920 = pneg %p1919
    $region54: #{tpu_custom_call.1} parent=5 // pred_check_branch
      %1922 = sbr.rel (%p1920) target = $region56
    $region55: #{tpu_custom_call.1} parent=5 // pred_region
      %s1923 = ssub.s32 %s13, 2
      // Predicated region
      $region57: #{tpu_custom_call.1} parent=55 // pred_check
        %p1924 = pneg %p194
      $region58: #{tpu_custom_call.1} parent=55 // pred_check_branch
        %1926 = sbr.rel (%p1924) target = $region60
      $region59: #{tpu_custom_call.1} parent=55 // pred_region
        %s1927 = smul.u32 64, %s19
        %p1928 = scmp.lt.s32.totalorder %s1927, 127
        %s1929 = scalar_select %p1928, %s1927, 127
        %s1930 = smul.addr %s1929, 8
        %s1931 = scalar_lea.vmem %s7, %s1930
      $region60: #{tpu_custom_call.1} parent=55 // pred_fallthru
        _
    $region56: #{tpu_custom_call.1} parent=5 // pred_fallthru
      _
  $region6: #{tpu_custom_call.1} parent=0 // loop_footer
    %s17 = sadd.s32 1, %s13
  $region7: #{tpu_custom_call.1} parent=0 // loop_footer_branch
    %12 = sbr.rel target = $region3
  $region8: #{tpu_custom_call.1} parent=0 // loop_exit
    _

</llo_original>
